<compile_context>
chip_gen: v6e
topology: v6e:2x2x1
jax: 0.10.0
libtpu: 0.0.40
codegen_flags: <defaults>
</compile_context>

<pallas_src>
import functools
import math

import numpy as np
import jax
import jax.numpy as jnp
from jax.experimental import pallas as pl
from jax.experimental.pallas import tpu as pltpu

# static model config (matches RGCNConcatModel defaults)
LM_HIDDEN = 1024
HIDDEN = 128
NUM_CLASSES = 8
NUM_RELATIONS = 3          # chain-forward, chain-backward, self-loop
NUM_RGCN_LAYERS = 2
LN_EPS = 1e-5
LOGIT_PAD = 128            # cls output padded to a full 128-lane tile (lane-dense stores)
PAD_NEG = -1e9             # bias of padded classes -> exp underflows to 0 in the CE


# ------------------------------ fused kernel ------------------------------- #

def _fused_forward_kernel(x_ref, lm_w_ref, lm_b_ref, ln_g_ref, ln_b_ref,
                          w_cat_ref, rgcn_b_ref, cls_w_ref, cls_b_ref,
                          labels_ref, amask_ref,
                          logits_ref, loss_ref, *, seq_len):
    f32 = jnp.float32
    bf16 = jnp.bfloat16

    # ---- lm_head: Linear(1024 -> 128), bf16 operands on the MXU, f32 accumulation ----
    h = jnp.dot(x_ref[...], lm_w_ref[...], preferred_element_type=f32)
    h = jnp.maximum(h + lm_b_ref[...], 0.0)                   # F.relu
    # dropout(p=0.4) -> identity (inference)

    # ---- lm_layer_norm over the 128-feature lane axis (single-pass variance) ----
    inv_d = 1.0 / HIDDEN
    mu = jnp.sum(h, axis=-1, keepdims=True) * inv_d
    ex2 = jnp.sum(h * h, axis=-1, keepdims=True) * inv_d
    var = ex2 - mu * mu
    lm_out = (h - mu) * jax.lax.rsqrt(var + LN_EPS) * ln_g_ref[...] + ln_b_ref[...]

    tm = lm_out.shape[0]                                       # rows in this tile

    # ---- sequence-boundary masks (tile rows are sequence-aligned: TM % S == 0) ----
    row = jax.lax.broadcasted_iota(jnp.int32, (tm, 1), 0)
    if seq_len & (seq_len - 1) == 0:                           # power-of-two fast path
        pos = jnp.bitwise_and(row, seq_len - 1)                # row % S
        not_start = (pos != 0).astype(f32)
        not_end = (pos != seq_len - 1).astype(f32)
    else:                                                      # float fallback (no int div)
        rowf = row.astype(f32)
        posf = rowf - jnp.floor(rowf * (1.0 / seq_len)) * seq_len
        not_start = (posf > 0.5).astype(f32)
        not_end = (posf < seq_len - 1.5).astype(f32)

    # ---- RGCN layers: chain graph -> XLU rolls + one fused K=384 MXU matmul/layer ----
    # out_i = W_root x_i + mean_{j in N_r(i)} W_r x_j + b ; self-loop already folded
    # into the first 128 rows of w_cat.
    out = lm_out
    for layer in range(NUM_RGCN_LAYERS):
        # relation 0: node i aggregates node i-1 (forward chain edge t -> t+1)
        agg_prev = pltpu.roll(out, shift=1, axis=0) * not_start
        # relation 1: node i aggregates node i+1 (backward chain edge t+1 -> t)
        agg_next = pltpu.roll(out, shift=tm - 1, axis=0) * not_end
        cat = jnp.concatenate([out, agg_prev, agg_next], axis=-1).astype(bf16)
        acc = jnp.dot(cat, w_cat_ref[layer], preferred_element_type=f32)
        out = jnp.maximum(acc + rgcn_b_ref[layer], 0.0)        # F.relu
        # dropout(p=0.4) -> identity (inference)

    # ---- cls head: concat(lm_out, rgcn_out) @ W, padded to 128 lane-dense columns ----
    feats = jnp.concatenate([lm_out, out], axis=-1).astype(bf16)        # (TM, 256)
    logits = (jnp.dot(feats, cls_w_ref[...], preferred_element_type=f32)
              + cls_b_ref[...])
    logits_ref[...] = logits.astype(logits_ref.dtype)

    # ---- masked token cross-entropy over the padded 128 lanes (pads hold -1e9) ----
    labels = labels_ref[...]                                    # (TM, 1) int32
    active = (amask_ref[...] == 1).astype(f32)                  # (TM, 1)
    cls_iota = jax.lax.broadcasted_iota(jnp.int32, logits.shape, 1)
    onehot = (cls_iota == labels).astype(f32)
    m = jnp.max(logits, axis=-1, keepdims=True)
    z = logits - m
    lse = jnp.log(jnp.sum(jnp.exp(z), axis=-1, keepdims=True))
    nll = -jnp.sum(onehot * (z - lse), axis=-1, keepdims=True)  # (TM, 1)
    loss_sum = jnp.sum(nll * active)
    count = jnp.sum(active)

    # per-tile partials (lane 0 = masked-loss sum, lane 1 = active-token count) so the
    # grid axis stays fully parallel (megacore / v7x 2-TC safe); wrapper does the divide.
    lane = jax.lax.broadcasted_iota(jnp.int32, (1, LOGIT_PAD), 1)
    part = jnp.where(lane == 0, loss_sum, 0.0) + jnp.where(lane == 1, count, 0.0)
    loss_ref[...] = part.reshape(1, 1, LOGIT_PAD)


# ------------------------------- model glue -------------------------------- #

def init_params(key):
    keys = iter(jax.random.split(key, 16))
    D, L, C = HIDDEN, NUM_RGCN_LAYERS, NUM_CLASSES

    def xavier(k, shape, fan_in, fan_out):
        limit = float(np.sqrt(6.0 / (fan_in + fan_out)))
        return jax.random.uniform(k, shape, jnp.float32, -limit, limit)

    # RGCNConv weights.  The self-loop relation (deg=1, mean agg == identity) is folded
    # into the root weight; forward/backward chain relations are stacked below it so each
    # layer is a single (3D, D) matmul against [out | agg_prev | agg_next].
    w_cat = []
    for _ in range(L):
        w_root = xavier(next(keys), (D, D), D, D)
        w_r0 = xavier(next(keys), (D, D), D, D)      # relation 0: t -> t+1
        w_r1 = xavier(next(keys), (D, D), D, D)      # relation 1: t+1 -> t
        w_r2 = xavier(next(keys), (D, D), D, D)      # relation 2: self-loop (folded)
        w_cat.append(jnp.concatenate([w_root + w_r2, w_r0, w_r1], axis=0))
    w_cat = jnp.stack(w_cat).astype(jnp.bfloat16)    # (L, 3D, D) bf16

    # cls_head Linear(2D -> C): output zero-padded to 128 lane-dense columns; padded
    # bias is -1e9 so padded classes vanish from the softmax.
    cls_w = xavier(next(keys), (2 * D, C), 2 * D, C)
    cls_w = jnp.pad(cls_w, ((0, 0), (0, LOGIT_PAD - C))).astype(jnp.bfloat16)
    cls_b = jnp.full((1, LOGIT_PAD), PAD_NEG, jnp.float32).at[0, :C].set(0.0)

    return {
        # nn.init.xavier_uniform_(lm_head.weight); constant_(bias, 0); stored [in, out]
        'lm_w': xavier(next(keys), (LM_HIDDEN, D), LM_HIDDEN, D).astype(jnp.bfloat16),
        'lm_b': jnp.zeros((1, D), jnp.float32),
        'ln_g': jnp.ones((1, D), jnp.float32),       # LayerNorm(128) gamma
        'ln_b': jnp.zeros((1, D), jnp.float32),      # LayerNorm(128) beta
        'w_cat': w_cat,
        'rgcn_b': jnp.zeros((L, 1, D), jnp.float32),
        'cls_w': cls_w,
        'cls_b': cls_b,
    }


def _choose_tile_rows(n_tokens, seq_len, max_rows=1024):
    """Largest TM <= max_rows dividing N that is a multiple of lcm(S, 8), so rolls never
    cross a tile/sequence boundary and sublane tiling stays aligned.  max_rows=1024 keeps
    double-buffered (TM, 1024) bf16 x-blocks + (TM, 128) f32 logits well inside v7x's
    64 MiB VMEM (and the 32 MiB scoped limit)."""
    step = (seq_len * 8) // math.gcd(seq_len, 8)     # lcm(S, 8)
    best = None
    tm = step
    while tm <= min(n_tokens, max_rows):
        if n_tokens % tm == 0:
            best = tm
        tm += step
    return best if best is not None else n_tokens    # fallback: single whole-block tile


def rgcn_concat_forward(last_hidden_state, attention_mask, labels, params):
    B, S, H = last_hidden_state.shape
    N = B * S
    TM = _choose_tile_rows(N, S)
    num_tiles = N // TM

    x = last_hidden_state.reshape(N, H).astype(jnp.bfloat16)
    labels2d = labels.reshape(N, 1).astype(jnp.int32)
    mask2d = attention_mask.reshape(N, 1).astype(jnp.int32)

    L, D = NUM_RGCN_LAYERS, HIDDEN
    kernel = functools.partial(_fused_forward_kernel, seq_len=S)

    logits_pad, loss_parts = pl.pallas_call(
        kernel,
        grid=(num_tiles,),
        out_shape=(
            jax.ShapeDtypeStruct((N, LOGIT_PAD), jnp.float32),
            jax.ShapeDtypeStruct((num_tiles, 1, LOGIT_PAD), jnp.float32),
        ),
        in_specs=[
            pl.BlockSpec((TM, LM_HIDDEN), lambda i: (i, 0)),        # x (token-tiled)
            pl.BlockSpec((LM_HIDDEN, D), lambda i: (0, 0)),         # lm_w (resident)
            pl.BlockSpec((1, D), lambda i: (0, 0)),                 # lm_b
            pl.BlockSpec((1, D), lambda i: (0, 0)),                 # ln_g
            pl.BlockSpec((1, D), lambda i: (0, 0)),                 # ln_b
            pl.BlockSpec((L, 3 * D, D), lambda i: (0, 0, 0)),       # w_cat (resident)
            pl.BlockSpec((L, 1, D), lambda i: (0, 0, 0)),           # rgcn_b
            pl.BlockSpec((2 * D, LOGIT_PAD), lambda i: (0, 0)),     # cls_w (resident)
            pl.BlockSpec((1, LOGIT_PAD), lambda i: (0, 0)),         # cls_b
            pl.BlockSpec((TM, 1), lambda i: (i, 0)),                # labels (tiled)
            pl.BlockSpec((TM, 1), lambda i: (i, 0)),                # attention mask
        ],
        out_specs=(
            pl.BlockSpec((TM, LOGIT_PAD), lambda i: (i, 0)),        # lane-dense logits
            pl.BlockSpec((1, 1, LOGIT_PAD), lambda i: (i, 0, 0)),   # per-tile loss parts
        ),
        compiler_params=pltpu.CompilerParams(
            dimension_semantics=("parallel",),
            vmem_limit_bytes=32 * 1024 * 1024,
        ),
    )(x, params['lm_w'], params['lm_b'], params['ln_g'], params['ln_b'],
      params['w_cat'], params['rgcn_b'], params['cls_w'], params['cls_b'],
      labels2d, mask2d)

    logits = logits_pad[:, :NUM_CLASSES].reshape(B, S, NUM_CLASSES)
    loss_sum = jnp.sum(loss_parts[:, 0, 0])
    count = jnp.sum(loss_parts[:, 0, 1])
    # guard: all tokens masked -> loss 0 instead of NaN (reference would give NaN)
    loss = loss_sum / jnp.maximum(count, 1.0)
    return {'loss': loss, 'logits': logits}


# ---------------------------------- main ----------------------------------- #

if __name__ == "__main__":
    B, S = 2, 8                  # batch, sequence length -> N = 16 graph nodes

    root = jax.random.PRNGKey(0)
    k_x, k_lbl, k_par = jax.random.split(root, 3)

    # TODO(synk): `last_hidden_state` stands in for the upstream LM's 1024-d output.
    last_hidden_state = jax.random.normal(k_x, (B, S, LM_HIDDEN), jnp.float32)
    attention_mask = jnp.asarray(
        np.array([[1] * S, [1] * (S - 2) + [0, 0]], dtype=np.int32))   # some padding
    labels = jax.random.randint(k_lbl, (B, S), 0, NUM_CLASSES, jnp.int32)

    params = init_params(k_par)

    fwd = jax.jit(rgcn_concat_forward)
    out = fwd(last_hidden_state, attention_mask, labels, params)
    jax.block_until_ready(out)

    assert out['logits'].shape == (B, S, NUM_CLASSES)
    assert bool(jnp.isfinite(out['loss']))
    print("KERNEL_OK")
</pallas_src>

<mosaic_0001>
module attributes {stable_mosaic.version = 11 : i64} {
  func.func @_fused_forward_kernel(%arg0: i32, %arg1: memref<16x1024xbf16, #tpu.memory_space<vmem>>, %arg2: memref<1024x128xbf16, #tpu.memory_space<vmem>>, %arg3: memref<1x128xf32, #tpu.memory_space<vmem>>, %arg4: memref<1x128xf32, #tpu.memory_space<vmem>>, %arg5: memref<1x128xf32, #tpu.memory_space<vmem>>, %arg6: memref<2x384x128xbf16, #tpu.memory_space<vmem>>, %arg7: memref<2x1x128xf32, #tpu.memory_space<vmem>>, %arg8: memref<256x128xbf16, #tpu.memory_space<vmem>>, %arg9: memref<1x128xf32, #tpu.memory_space<vmem>>, %arg10: memref<16x1xi32, #tpu.memory_space<vmem>>, %arg11: memref<16x1xi32, #tpu.memory_space<vmem>>, %arg12: memref<16x128xf32, #tpu.memory_space<vmem>>, %arg13: memref<1x1x128xf32, #tpu.memory_space<vmem>>) attributes {dimension_semantics = [#tpu.dimension_semantics<parallel>], iteration_bounds = array<i64: 1>, scalar_prefetch = 0 : i64, scratch_operands = 0 : i64, tpu.core_type = #tpu.core_type<tc>, window_params = [{transform_indices = @transform_0, window_bounds = array<i64: 16, 1024>}, {pipeline_mode = #tpu.pipeline_mode<synchronous>, transform_indices = @transform_1, window_bounds = array<i64: 1024, 128>}, {pipeline_mode = #tpu.pipeline_mode<synchronous>, transform_indices = @transform_2, window_bounds = array<i64: 1, 128>}, {pipeline_mode = #tpu.pipeline_mode<synchronous>, transform_indices = @transform_3, window_bounds = array<i64: 1, 128>}, {pipeline_mode = #tpu.pipeline_mode<synchronous>, transform_indices = @transform_4, window_bounds = array<i64: 1, 128>}, {pipeline_mode = #tpu.pipeline_mode<synchronous>, transform_indices = @transform_5, window_bounds = array<i64: 2, 384, 128>}, {pipeline_mode = #tpu.pipeline_mode<synchronous>, transform_indices = @transform_6, window_bounds = array<i64: 2, 1, 128>}, {pipeline_mode = #tpu.pipeline_mode<synchronous>, transform_indices = @transform_7, window_bounds = array<i64: 256, 128>}, {pipeline_mode = #tpu.pipeline_mode<synchronous>, transform_indices = @transform_8, window_bounds = array<i64: 1, 128>}, {transform_indices = @transform_9, window_bounds = array<i64: 16, 1>}, {transform_indices = @transform_10, window_bounds = array<i64: 16, 1>}, {transform_indices = @transform_11, window_bounds = array<i64: 16, 128>}, {transform_indices = @transform_12, window_bounds = array<i64: 1, 1, 128>}]} {
    %c0 = arith.constant 0 : index
    %c0_0 = arith.constant 0 : index
    %0 = vector.load %arg1[%c0, %c0_0] : memref<16x1024xbf16, #tpu.memory_space<vmem>>, vector<16x1024xbf16>
    %c0_1 = arith.constant 0 : index
    %c0_2 = arith.constant 0 : index
    %1 = vector.load %arg2[%c0_1, %c0_2] : memref<1024x128xbf16, #tpu.memory_space<vmem>>, vector<1024x128xbf16>
    %cst = arith.constant dense<0.000000e+00> : vector<16x128xf32>
    %2 = tpu.matmul %0, %1, %cst {dimension_numbers = #tpu.dot_dimension_numbers<[1], [0], [0], [1], [0, 0, 1, 1], [], []>} : vector<16x1024xbf16>, vector<1024x128xbf16>, vector<16x128xf32> -> vector<16x128xf32>
    %c0_3 = arith.constant 0 : index
    %c0_4 = arith.constant 0 : index
    %3 = vector.load %arg3[%c0_3, %c0_4] : memref<1x128xf32, #tpu.memory_space<vmem>>, vector<1x128xf32>
    %4 = vector.broadcast %3 : vector<1x128xf32> to vector<16x128xf32>
    %5 = arith.addf %2, %4 : vector<16x128xf32>
    %cst_5 = arith.constant 0.000000e+00 : f32
    %6 = vector.broadcast %cst_5 : f32 to vector<16x128xf32>
    %7 = arith.maximumf %5, %6 : vector<16x128xf32>
    %cst_6 = arith.constant dense<0.000000e+00> : vector<16xf32>
    %8 = vector.multi_reduction <add>, %7, %cst_6 [1] : vector<16x128xf32> to vector<16xf32>
    %9 = vector.shape_cast %8 : vector<16xf32> to vector<16x1xf32>
    %cst_7 = arith.constant 7.812500e-03 : f32
    %10 = vector.broadcast %cst_7 : f32 to vector<16x1xf32>
    %11 = arith.mulf %9, %10 : vector<16x1xf32>
    %12 = arith.mulf %7, %7 : vector<16x128xf32>
    %cst_8 = arith.constant dense<0.000000e+00> : vector<16xf32>
    %13 = vector.multi_reduction <add>, %12, %cst_8 [1] : vector<16x128xf32> to vector<16xf32>
    %14 = vector.shape_cast %13 : vector<16xf32> to vector<16x1xf32>
    %cst_9 = arith.constant 7.812500e-03 : f32
    %15 = vector.broadcast %cst_9 : f32 to vector<16x1xf32>
    %16 = arith.mulf %14, %15 : vector<16x1xf32>
    %17 = arith.mulf %11, %11 : vector<16x1xf32>
    %18 = arith.subf %16, %17 : vector<16x1xf32>
    %19 = vector.broadcast %11 : vector<16x1xf32> to vector<16x128xf32>
    %20 = arith.subf %7, %19 : vector<16x128xf32>
    %cst_10 = arith.constant 9.99999974E-6 : f32
    %21 = vector.broadcast %cst_10 : f32 to vector<16x1xf32>
    %22 = arith.addf %18, %21 : vector<16x1xf32>
    %23 = math.rsqrt %22 : vector<16x1xf32>
    %24 = vector.broadcast %23 : vector<16x1xf32> to vector<16x128xf32>
    %25 = arith.mulf %20, %24 : vector<16x128xf32>
    %c0_11 = arith.constant 0 : index
    %c0_12 = arith.constant 0 : index
    %26 = vector.load %arg4[%c0_11, %c0_12] : memref<1x128xf32, #tpu.memory_space<vmem>>, vector<1x128xf32>
    %27 = vector.broadcast %26 : vector<1x128xf32> to vector<16x128xf32>
    %28 = arith.mulf %25, %27 : vector<16x128xf32>
    %c0_13 = arith.constant 0 : index
    %c0_14 = arith.constant 0 : index
    %29 = vector.load %arg5[%c0_13, %c0_14] : memref<1x128xf32, #tpu.memory_space<vmem>>, vector<1x128xf32>
    %30 = vector.broadcast %29 : vector<1x128xf32> to vector<16x128xf32>
    %31 = arith.addf %28, %30 : vector<16x128xf32>
    %32 = tpu.iota {dimensions = array<i32: 0>} : vector<16x1xi32>
    %c7_i32 = arith.constant 7 : i32
    %33 = vector.broadcast %c7_i32 : i32 to vector<16x1xi32>
    %34 = arith.andi %32, %33 : vector<16x1xi32>
    %c0_i32 = arith.constant 0 : i32
    %35 = vector.broadcast %c0_i32 : i32 to vector<16x1xi32>
    %36 = arith.cmpi ne, %34, %35 : vector<16x1xi32>
    %37 = arith.extui %36 : vector<16x1xi1> to vector<16x1xi32>
    %38 = arith.sitofp %37 : vector<16x1xi32> to vector<16x1xf32>
    %c7_i32_15 = arith.constant 7 : i32
    %39 = vector.broadcast %c7_i32_15 : i32 to vector<16x1xi32>
    %40 = arith.cmpi ne, %34, %39 : vector<16x1xi32>
    %41 = arith.extui %40 : vector<16x1xi1> to vector<16x1xi32>
    %42 = arith.sitofp %41 : vector<16x1xi32> to vector<16x1xf32>
    %c1_i32 = arith.constant 1 : i32
    %43 = tpu.dynamic_rotate %31 by %c1_i32 dim 0 : vector<16x128xf32>, i32 -> vector<16x128xf32>
    %44 = vector.broadcast %38 : vector<16x1xf32> to vector<16x128xf32>
    %45 = arith.mulf %43, %44 : vector<16x128xf32>
    %c15_i32 = arith.constant 15 : i32
    %46 = tpu.dynamic_rotate %31 by %c15_i32 dim 0 : vector<16x128xf32>, i32 -> vector<16x128xf32>
    %47 = vector.broadcast %42 : vector<16x1xf32> to vector<16x128xf32>
    %48 = arith.mulf %46, %47 : vector<16x128xf32>
    %49 = tpu.concatenate %31, %45, %48 in 1 : vector<16x128xf32>, vector<16x128xf32>, vector<16x128xf32> -> vector<16x384xf32>
    %50 = arith.truncf %49 : vector<16x384xf32> to vector<16x384xbf16>
    %c0_16 = arith.constant 0 : index
    %c0_17 = arith.constant 0 : index
    %c0_18 = arith.constant 0 : index
    %51 = vector.load %arg6[%c0_16, %c0_17, %c0_18] : memref<2x384x128xbf16, #tpu.memory_space<vmem>>, vector<1x384x128xbf16>
    %52 = vector.shape_cast %51 : vector<1x384x128xbf16> to vector<384x128xbf16>
    %cst_19 = arith.constant dense<0.000000e+00> : vector<16x128xf32>
    %53 = tpu.matmul %50, %52, %cst_19 {dimension_numbers = #tpu.dot_dimension_numbers<[1], [0], [0], [1], [0, 0, 1, 1], [], []>} : vector<16x384xbf16>, vector<384x128xbf16>, vector<16x128xf32> -> vector<16x128xf32>
    %c0_20 = arith.constant 0 : index
    %c0_21 = arith.constant 0 : index
    %c0_22 = arith.constant 0 : index
    %54 = vector.load %arg7[%c0_20, %c0_21, %c0_22] : memref<2x1x128xf32, #tpu.memory_space<vmem>>, vector<1x1x128xf32>
    %55 = vector.shape_cast %54 : vector<1x1x128xf32> to vector<1x128xf32>
    %56 = vector.broadcast %55 : vector<1x128xf32> to vector<16x128xf32>
    %57 = arith.addf %53, %56 : vector<16x128xf32>
    %cst_23 = arith.constant 0.000000e+00 : f32
    %58 = vector.broadcast %cst_23 : f32 to vector<16x128xf32>
    %59 = arith.maximumf %57, %58 : vector<16x128xf32>
    %c1_i32_24 = arith.constant 1 : i32
    %60 = tpu.dynamic_rotate %59 by %c1_i32_24 dim 0 : vector<16x128xf32>, i32 -> vector<16x128xf32>
    %61 = vector.broadcast %38 : vector<16x1xf32> to vector<16x128xf32>
    %62 = arith.mulf %60, %61 : vector<16x128xf32>
    %c15_i32_25 = arith.constant 15 : i32
    %63 = tpu.dynamic_rotate %59 by %c15_i32_25 dim 0 : vector<16x128xf32>, i32 -> vector<16x128xf32>
    %64 = vector.broadcast %42 : vector<16x1xf32> to vector<16x128xf32>
    %65 = arith.mulf %63, %64 : vector<16x128xf32>
    %66 = tpu.concatenate %59, %62, %65 in 1 : vector<16x128xf32>, vector<16x128xf32>, vector<16x128xf32> -> vector<16x384xf32>
    %67 = arith.truncf %66 : vector<16x384xf32> to vector<16x384xbf16>
    %c1 = arith.constant 1 : index
    %c0_26 = arith.constant 0 : index
    %c0_27 = arith.constant 0 : index
    %68 = vector.load %arg6[%c1, %c0_26, %c0_27] : memref<2x384x128xbf16, #tpu.memory_space<vmem>>, vector<1x384x128xbf16>
    %69 = vector.shape_cast %68 : vector<1x384x128xbf16> to vector<384x128xbf16>
    %cst_28 = arith.constant dense<0.000000e+00> : vector<16x128xf32>
    %70 = tpu.matmul %67, %69, %cst_28 {dimension_numbers = #tpu.dot_dimension_numbers<[1], [0], [0], [1], [0, 0, 1, 1], [], []>} : vector<16x384xbf16>, vector<384x128xbf16>, vector<16x128xf32> -> vector<16x128xf32>
    %c1_29 = arith.constant 1 : index
    %c0_30 = arith.constant 0 : index
    %c0_31 = arith.constant 0 : index
    %71 = vector.load %arg7[%c1_29, %c0_30, %c0_31] : memref<2x1x128xf32, #tpu.memory_space<vmem>>, vector<1x1x128xf32>
    %72 = vector.shape_cast %71 : vector<1x1x128xf32> to vector<1x128xf32>
    %73 = vector.broadcast %72 : vector<1x128xf32> to vector<16x128xf32>
    %74 = arith.addf %70, %73 : vector<16x128xf32>
    %cst_32 = arith.constant 0.000000e+00 : f32
    %75 = vector.broadcast %cst_32 : f32 to vector<16x128xf32>
    %76 = arith.maximumf %74, %75 : vector<16x128xf32>
    %77 = tpu.concatenate %31, %76 in 1 : vector<16x128xf32>, vector<16x128xf32> -> vector<16x256xf32>
    %78 = arith.truncf %77 : vector<16x256xf32> to vector<16x256xbf16>
    %c0_33 = arith.constant 0 : index
    %c0_34 = arith.constant 0 : index
    %79 = vector.load %arg8[%c0_33, %c0_34] : memref<256x128xbf16, #tpu.memory_space<vmem>>, vector<256x128xbf16>
    %cst_35 = arith.constant dense<0.000000e+00> : vector<16x128xf32>
    %80 = tpu.matmul %78, %79, %cst_35 {dimension_numbers = #tpu.dot_dimension_numbers<[1], [0], [0], [1], [0, 0, 1, 1], [], []>} : vector<16x256xbf16>, vector<256x128xbf16>, vector<16x128xf32> -> vector<16x128xf32>
    %c0_36 = arith.constant 0 : index
    %c0_37 = arith.constant 0 : index
    %81 = vector.load %arg9[%c0_36, %c0_37] : memref<1x128xf32, #tpu.memory_space<vmem>>, vector<1x128xf32>
    %82 = vector.broadcast %81 : vector<1x128xf32> to vector<16x128xf32>
    %83 = arith.addf %80, %82 : vector<16x128xf32>
    %c0_38 = arith.constant 0 : index
    %c0_39 = arith.constant 0 : index
    %84 = vector.load %arg12[%c0_38, %c0_39] : memref<16x128xf32, #tpu.memory_space<vmem>>, vector<16x128xf32>
    tpu.vector_store %arg12[%c0_38, %c0_39], %83 {strides = array<i32>} : memref<16x128xf32, #tpu.memory_space<vmem>>, vector<16x128xf32>,
    %c0_40 = arith.constant 0 : index
    %c0_41 = arith.constant 0 : index
    %85 = vector.load %arg10[%c0_40, %c0_41] : memref<16x1xi32, #tpu.memory_space<vmem>>, vector<16x1xi32>
    %c0_42 = arith.constant 0 : index
    %c0_43 = arith.constant 0 : index
    %86 = vector.load %arg11[%c0_42, %c0_43] : memref<16x1xi32, #tpu.memory_space<vmem>>, vector<16x1xi32>
    %c1_i32_44 = arith.constant 1 : i32
    %87 = vector.broadcast %c1_i32_44 : i32 to vector<16x1xi32>
    %88 = arith.cmpi eq, %86, %87 : vector<16x1xi32>
    %89 = arith.extui %88 : vector<16x1xi1> to vector<16x1xi32>
    %90 = arith.sitofp %89 : vector<16x1xi32> to vector<16x1xf32>
    %91 = tpu.iota {dimensions = array<i32: 1>} : vector<16x128xi32>
    %92 = vector.broadcast %85 : vector<16x1xi32> to vector<16x128xi32>
    %93 = arith.cmpi eq, %91, %92 : vector<16x128xi32>
    %94 = arith.extui %93 : vector<16x128xi1> to vector<16x128xi32>
    %95 = arith.sitofp %94 : vector<16x128xi32> to vector<16x128xf32>
    %cst_45 = arith.constant dense<0xFF800000> : vector<16xf32>
    %96 = vector.multi_reduction <maximumf>, %83, %cst_45 [1] : vector<16x128xf32> to vector<16xf32>
    %97 = vector.shape_cast %96 : vector<16xf32> to vector<16x1xf32>
    %98 = vector.broadcast %97 : vector<16x1xf32> to vector<16x128xf32>
    %99 = arith.subf %83, %98 : vector<16x128xf32>
    %100 = math.exp %99 : vector<16x128xf32>
    %cst_46 = arith.constant dense<0.000000e+00> : vector<16xf32>
    %101 = vector.multi_reduction <add>, %100, %cst_46 [1] : vector<16x128xf32> to vector<16xf32>
    %102 = vector.shape_cast %101 : vector<16xf32> to vector<16x1xf32>
    %103 = math.log %102 : vector<16x1xf32>
    %104 = vector.broadcast %103 : vector<16x1xf32> to vector<16x128xf32>
    %105 = arith.subf %99, %104 : vector<16x128xf32>
    %106 = arith.mulf %95, %105 : vector<16x128xf32>
    %cst_47 = arith.constant dense<0.000000e+00> : vector<16xf32>
    %107 = vector.multi_reduction <add>, %106, %cst_47 [1] : vector<16x128xf32> to vector<16xf32>
    %108 = vector.shape_cast %107 : vector<16xf32> to vector<16x1xf32>
    %cst_48 = arith.constant 0.000000e+00 : f32
    %109 = vector.broadcast %cst_48 : f32 to vector<16x1xf32>
    %110 = arith.subf %109, %108 : vector<16x1xf32>
    %111 = arith.mulf %110, %90 : vector<16x1xf32>
    %112 = vector.shape_cast %111 : vector<16x1xf32> to vector<1x16x1xf32>
    %cst_49 = arith.constant dense<0.000000e+00> : vector<1xf32>
    %113 = vector.multi_reduction <add>, %112, %cst_49 [1, 2] : vector<1x16x1xf32> to vector<1xf32>
    %114 = vector.shape_cast %113 : vector<1xf32> to vector<1x1x1xf32>
    %115 = vector.extract %114[0, 0, 0] : f32 from vector<1x1x1xf32>
    %116 = vector.shape_cast %90 : vector<16x1xf32> to vector<1x16x1xf32>
    %cst_50 = arith.constant dense<0.000000e+00> : vector<1xf32>
    %117 = vector.multi_reduction <add>, %116, %cst_50 [1, 2] : vector<1x16x1xf32> to vector<1xf32>
    %118 = vector.shape_cast %117 : vector<1xf32> to vector<1x1x1xf32>
    %119 = vector.extract %118[0, 0, 0] : f32 from vector<1x1x1xf32>
    %120 = tpu.iota {dimensions = array<i32: 1>} : vector<1x128xi32>
    %c0_i32_51 = arith.constant 0 : i32
    %121 = vector.broadcast %c0_i32_51 : i32 to vector<1x128xi32>
    %122 = arith.cmpi eq, %120, %121 : vector<1x128xi32>
    %cst_52 = arith.constant 0.000000e+00 : f32
    %123 = vector.broadcast %115 : f32 to vector<1x128xf32>
    %124 = vector.broadcast %cst_52 : f32 to vector<1x128xf32>
    %125 = arith.select %122, %123, %124 : vector<1x128xi1>, vector<1x128xf32>
    %c1_i32_53 = arith.constant 1 : i32
    %126 = vector.broadcast %c1_i32_53 : i32 to vector<1x128xi32>
    %127 = arith.cmpi eq, %120, %126 : vector<1x128xi32>
    %cst_54 = arith.constant 0.000000e+00 : f32
    %128 = vector.broadcast %119 : f32 to vector<1x128xf32>
    %129 = vector.broadcast %cst_54 : f32 to vector<1x128xf32>
    %130 = arith.select %127, %128, %129 : vector<1x128xi1>, vector<1x128xf32>
    %131 = arith.addf %125, %130 : vector<1x128xf32>
    %132 = vector.shape_cast %131 : vector<1x128xf32> to vector<1x1x128xf32>
    %c0_55 = arith.constant 0 : index
    %c0_56 = arith.constant 0 : index
    %c0_57 = arith.constant 0 : index
    %133 = vector.load %arg13[%c0_55, %c0_56, %c0_57] : memref<1x1x128xf32, #tpu.memory_space<vmem>>, vector<1x1x128xf32>
    tpu.vector_store %arg13[%c0_55, %c0_56, %c0_57], %132 {strides = array<i32>} : memref<1x1x128xf32, #tpu.memory_space<vmem>>, vector<1x1x128xf32>,
    return
  }
  func.func @transform_0(%arg0: i32) -> (i32, i32) {
    %c0_i32 = arith.constant 0 : i32
    %c0_i32_0 = arith.constant 0 : i32
    return %arg0, %c0_i32 : i32, i32
  }
  func.func @transform_1(%arg0: i32) -> (i32, i32) {
    %c0_i32 = arith.constant 0 : i32
    %c0_i32_0 = arith.constant 0 : i32
    %c0_i32_1 = arith.constant 0 : i32
    return %c0_i32, %c0_i32_0 : i32, i32
  }
  func.func @transform_2(%arg0: i32) -> (i32, i32) {
    %c0_i32 = arith.constant 0 : i32
    %c0_i32_0 = arith.constant 0 : i32
    %c0_i32_1 = arith.constant 0 : i32
    return %c0_i32, %c0_i32_0 : i32, i32
  }
  func.func @transform_3(%arg0: i32) -> (i32, i32) {
    %c0_i32 = arith.constant 0 : i32
    %c0_i32_0 = arith.constant 0 : i32
    %c0_i32_1 = arith.constant 0 : i32
    return %c0_i32, %c0_i32_0 : i32, i32
  }
  func.func @transform_4(%arg0: i32) -> (i32, i32) {
    %c0_i32 = arith.constant 0 : i32
    %c0_i32_0 = arith.constant 0 : i32
    %c0_i32_1 = arith.constant 0 : i32
    return %c0_i32, %c0_i32_0 : i32, i32
  }
  func.func @transform_5(%arg0: i32) -> (i32, i32, i32) {
    %c0_i32 = arith.constant 0 : i32
    %c0_i32_0 = arith.constant 0 : i32
    %c0_i32_1 = arith.constant 0 : i32
    %c0_i32_2 = arith.constant 0 : i32
    return %c0_i32, %c0_i32_0, %c0_i32_1 : i32, i32, i32
  }
  func.func @transform_6(%arg0: i32) -> (i32, i32, i32) {
    %c0_i32 = arith.constant 0 : i32
    %c0_i32_0 = arith.constant 0 : i32
    %c0_i32_1 = arith.constant 0 : i32
    %c0_i32_2 = arith.constant 0 : i32
    return %c0_i32, %c0_i32_0, %c0_i32_1 : i32, i32, i32
  }
  func.func @transform_7(%arg0: i32) -> (i32, i32) {
    %c0_i32 = arith.constant 0 : i32
    %c0_i32_0 = arith.constant 0 : i32
    %c0_i32_1 = arith.constant 0 : i32
    return %c0_i32, %c0_i32_0 : i32, i32
  }
  func.func @transform_8(%arg0: i32) -> (i32, i32) {
    %c0_i32 = arith.constant 0 : i32
    %c0_i32_0 = arith.constant 0 : i32
    %c0_i32_1 = arith.constant 0 : i32
    return %c0_i32, %c0_i32_0 : i32, i32
  }
  func.func @transform_9(%arg0: i32) -> (i32, i32) {
    %c0_i32 = arith.constant 0 : i32
    %c0_i32_0 = arith.constant 0 : i32
    return %arg0, %c0_i32 : i32, i32
  }
  func.func @transform_10(%arg0: i32) -> (i32, i32) {
    %c0_i32 = arith.constant 0 : i32
    %c0_i32_0 = arith.constant 0 : i32
    return %arg0, %c0_i32 : i32, i32
  }
  func.func @transform_11(%arg0: i32) -> (i32, i32) {
    %c0_i32 = arith.constant 0 : i32
    %c0_i32_0 = arith.constant 0 : i32
    return %arg0, %c0_i32 : i32, i32
  }
  func.func @transform_12(%arg0: i32) -> (i32, i32, i32) {
    %c0_i32 = arith.constant 0 : i32
    %c0_i32_0 = arith.constant 0 : i32
    %c0_i32_1 = arith.constant 0 : i32
    return %arg0, %c0_i32, %c0_i32_0 : i32, i32, i32
  }
}

</mosaic_0001>

<llo_original>
// kernel: rgcn_concat_forward.1
$region0: #{rgcn_concat_forward.1}
  #allocation0 [shape = 'u32[]', space=smem, size = 0x4, offset = 0x4, fixed_abs, tag = 'smem constant byte address 0x4 - core index']
  #allocation1 [shape = 'u32[144,128]{1,0:T(1,128)}', space=vmem, size = 0x12000, scoped, tag = 'internal scratch']
  %s0 = inlined_call_operand.vmem [shape: bf16[16,1024], index: 0, kind: input, shape index: {}]
  %s1 = inlined_call_operand.hbm [shape: bf16[1024,128], index: 1, kind: input, shape index: {}]
  %s2 = inlined_call_operand.vmem [shape: f32[1,128], index: 2, kind: input, shape index: {}]
  %s3 = inlined_call_operand.vmem [shape: f32[1,128], index: 3, kind: input, shape index: {}]
  %s4 = inlined_call_operand.vmem [shape: f32[1,128], index: 4, kind: input, shape index: {}]
  %s5 = inlined_call_operand.hbm [shape: bf16[2,384,128], index: 5, kind: input, shape index: {}]
  %s6 = inlined_call_operand.vmem [shape: f32[2,1,128], index: 6, kind: input, shape index: {}]
  %s7 = inlined_call_operand.vmem [shape: bf16[256,128], index: 7, kind: input, shape index: {}]
  %s8 = inlined_call_operand.vmem [shape: f32[1,128], index: 8, kind: input, shape index: {}]
  %s9 = inlined_call_operand.vmem [shape: s32[16,1], index: 9, kind: input, shape index: {}]
  %s10 = inlined_call_operand.vmem [shape: s32[16,1], index: 10, kind: input, shape index: {}]
  %s11 = inlined_call_operand.vmem [shape: f32[16,128], index: 11, kind: output, shape index: {0}]
  %s12 = inlined_call_operand.vmem [shape: f32[1,1,128], index: 12, kind: output, shape index: {1}]
  %13 = xla_tuple %s11, %s12
  %s14 = sld [smem:[#allocation0]]
  $region70: #{rgcn_concat_forward.1} parent=0
    _
  %s16 = ssub.s32 1, %s14
  %s17 = scalar_select 0, %s16, %s14
  $region1: #{rgcn_concat_forward.1} parent=0
    #allocation2 [shape = 'u8[262144]{0}', space=vmem, size = 0x40000, scoped, tag = 'input window, operand 1, single buffered']
    #allocation3 [shape = 's32[1]{0}', space=sflag, size = 0x4, scoped, tag = 'scoped memory for rgcn_concat_forward.1']
    #allocation4 [shape = 'u8[196608]{0}', space=vmem, size = 0x30000, scoped, tag = 'input window, operand 5, single buffered']
    #allocation5 [shape = 's32[1]{0}', space=sflag, size = 0x4, scoped, tag = 'scoped memory for rgcn_concat_forward.1']
    %18 = vsyncpa [#allocation3], 0
    %19 = vsyncpa [#allocation5], 0
    // Predicated region
    $region2: #{rgcn_concat_forward.1} parent=1 // pred_check
      _
    $region3: #{rgcn_concat_forward.1} parent=1 // pred_check_branch
      %21 = sbr.rel (0) target = $region5
    $region4: #{rgcn_concat_forward.1} parent=1 // pred_region
      _
    $region5: #{rgcn_concat_forward.1} parent=1 // pred_fallthru
      _
    // Predicated region
    $region6: #{rgcn_concat_forward.1} parent=1 // pred_check
      _
    $region7: #{rgcn_concat_forward.1} parent=1 // pred_check_branch
      %23 = sbr.rel (0) target = $region9
    $region8: #{rgcn_concat_forward.1} parent=1 // pred_region
      %s25 = ssub.s32 8192, 8192
      %26 = vsyncadd [#allocation3], %s25
      %s27 = sshll.u32 [#allocation2], 4
      %s28 = int_to_ptr.vmem [resolvable:$true] %s27
      %33 = dma.hbm_to_vmem [thread:$0]  %s1, 8192, %s28, [#allocation3], 64, 64, 4
    $region9: #{rgcn_concat_forward.1} parent=1 // pred_fallthru
      _
    // Predicated region
    $region10: #{rgcn_concat_forward.1} parent=1 // pred_check
      _
    $region11: #{rgcn_concat_forward.1} parent=1 // pred_check_branch
      %35 = sbr.rel (0) target = $region13
    $region12: #{rgcn_concat_forward.1} parent=1 // pred_region
      _
    $region13: #{rgcn_concat_forward.1} parent=1 // pred_fallthru
      _
    // Predicated region
    $region14: #{rgcn_concat_forward.1} parent=1 // pred_check
      _
    $region15: #{rgcn_concat_forward.1} parent=1 // pred_check_branch
      %37 = sbr.rel (0) target = $region17
    $region16: #{rgcn_concat_forward.1} parent=1 // pred_region
      _
    $region17: #{rgcn_concat_forward.1} parent=1 // pred_fallthru
      _
    // Predicated region
    $region18: #{rgcn_concat_forward.1} parent=1 // pred_check
      _
    $region19: #{rgcn_concat_forward.1} parent=1 // pred_check_branch
      %39 = sbr.rel (0) target = $region21
    $region20: #{rgcn_concat_forward.1} parent=1 // pred_region
      _
    $region21: #{rgcn_concat_forward.1} parent=1 // pred_fallthru
      _
    // Predicated region
    $region22: #{rgcn_concat_forward.1} parent=1 // pred_check
      _
    $region23: #{rgcn_concat_forward.1} parent=1 // pred_check_branch
      %41 = sbr.rel (0) target = $region25
    $region24: #{rgcn_concat_forward.1} parent=1 // pred_region
      %s43 = ssub.s32 6144, 6144
      %44 = vsyncadd [#allocation5], %s43
      %s45 = sshll.u32 [#allocation4], 4
      %s46 = int_to_ptr.vmem [resolvable:$true] %s45
      %51 = dma.hbm_to_vmem [thread:$0]  %s5, 6144, %s46, [#allocation5], 64, 64, 4
    $region25: #{rgcn_concat_forward.1} parent=1 // pred_fallthru
      _
    // Predicated region
    $region26: #{rgcn_concat_forward.1} parent=1 // pred_check
      _
    $region27: #{rgcn_concat_forward.1} parent=1 // pred_check_branch
      %53 = sbr.rel (0) target = $region29
    $region28: #{rgcn_concat_forward.1} parent=1 // pred_region
      _
    $region29: #{rgcn_concat_forward.1} parent=1 // pred_fallthru
      _
    // Predicated region
    $region30: #{rgcn_concat_forward.1} parent=1 // pred_check
      _
    $region31: #{rgcn_concat_forward.1} parent=1 // pred_check_branch
      %55 = sbr.rel (0) target = $region33
    $region32: #{rgcn_concat_forward.1} parent=1 // pred_region
      _
    $region33: #{rgcn_concat_forward.1} parent=1 // pred_fallthru
      _
    // Predicated region
    $region34: #{rgcn_concat_forward.1} parent=1 // pred_check
      _
    $region35: #{rgcn_concat_forward.1} parent=1 // pred_check_branch
      %57 = sbr.rel (0) target = $region37
    $region36: #{rgcn_concat_forward.1} parent=1 // pred_region
      _
    $region37: #{rgcn_concat_forward.1} parent=1 // pred_fallthru
      _
    // Predicated region
    $region38: #{rgcn_concat_forward.1} parent=1 // pred_check
      _
    $region39: #{rgcn_concat_forward.1} parent=1 // pred_check_branch
      %59 = sbr.rel (0) target = $region41
    $region40: #{rgcn_concat_forward.1} parent=1 // pred_region
      _
    $region41: #{rgcn_concat_forward.1} parent=1 // pred_fallthru
      _
    // Predicated region
    $region42: #{rgcn_concat_forward.1} parent=1 // pred_check
      _
    $region43: #{rgcn_concat_forward.1} parent=1 // pred_check_branch
      %61 = sbr.rel (0) target = $region45
    $region44: #{rgcn_concat_forward.1} parent=1 // pred_region
      _
    $region45: #{rgcn_concat_forward.1} parent=1 // pred_fallthru
      _
    // Predicated region
    $region46: #{rgcn_concat_forward.1} parent=1 // pred_check
      _
    $region47: #{rgcn_concat_forward.1} parent=1 // pred_check_branch
      %63 = sbr.rel (0) target = $region49
    $region48: #{rgcn_concat_forward.1} parent=1 // pred_region
      %64 = dma.done [#allocation3], 8192
    $region49: #{rgcn_concat_forward.1} parent=1 // pred_fallthru
      _
    // Predicated region
    $region50: #{rgcn_concat_forward.1} parent=1 // pred_check
      _
    $region51: #{rgcn_concat_forward.1} parent=1 // pred_check_branch
      %66 = sbr.rel (0) target = $region53
    $region52: #{rgcn_concat_forward.1} parent=1 // pred_region
      %67 = dma.done [#allocation5], 6144
    $region53: #{rgcn_concat_forward.1} parent=1 // pred_fallthru
      _
    %v69 = vld [vmem:[%s0] sm:$0xff]
    %v70 = vld [vmem:[%s0 + $0x8] sm:$0xff]
    %v71 = vld [vmem:[%s0 + $0x10] sm:$0xff]
    %v72 = vld [vmem:[%s0 + $0x18] sm:$0xff]
    %v73 = vld [vmem:[%s0 + $0x20] sm:$0xff]
    %v74 = vld [vmem:[%s0 + $0x28] sm:$0xff]
    %v75 = vld [vmem:[%s0 + $0x30] sm:$0xff]
    %v76 = vld [vmem:[%s0 + $0x38] sm:$0xff]
    %v77 = vld [vmem:[#allocation2] sm:$0xf]
    %v78 = vld [vmem:[#allocation2 + $0x4] sm:$0xf]
    %v79 = vld [vmem:[#allocation2 + $0x8] sm:$0xf]
    %v80 = vld [vmem:[#allocation2 + $0xc] sm:$0xf]
    %v81 = vld [vmem:[#allocation2 + $0x10] sm:$0xf]
    %v82 = vld [vmem:[#allocation2 + $0x14] sm:$0xf]
    %v83 = vld [vmem:[#allocation2 + $0x18] sm:$0xf]
    %v84 = vld [vmem:[#allocation2 + $0x1c] sm:$0xf]
    %v85 = vld [vmem:[#allocation2 + $0x20] sm:$0xf]
    %v86 = vld [vmem:[#allocation2 + $0x24] sm:$0xf]
    %v87 = vld [vmem:[#allocation2 + $0x28] sm:$0xf]
    %v88 = vld [vmem:[#allocation2 + $0x2c] sm:$0xf]
    %v89 = vld [vmem:[#allocation2 + $0x30] sm:$0xf]
    %v90 = vld [vmem:[#allocation2 + $0x34] sm:$0xf]
    %v91 = vld [vmem:[#allocation2 + $0x38] sm:$0xf]
    %v92 = vld [vmem:[#allocation2 + $0x3c] sm:$0xf]
    %v93 = vld [vmem:[#allocation2 + $0x40] sm:$0xf]
    %v94 = vld [vmem:[#allocation2 + $0x44] sm:$0xf]
    %v95 = vld [vmem:[#allocation2 + $0x48] sm:$0xf]
    %v96 = vld [vmem:[#allocation2 + $0x4c] sm:$0xf]
    %v97 = vld [vmem:[#allocation2 + $0x50] sm:$0xf]
    %v98 = vld [vmem:[#allocation2 + $0x54] sm:$0xf]
    %v99 = vld [vmem:[#allocation2 + $0x58] sm:$0xf]
    %v100 = vld [vmem:[#allocation2 + $0x5c] sm:$0xf]
    %v101 = vld [vmem:[#allocation2 + $0x60] sm:$0xf]
    %v102 = vld [vmem:[#allocation2 + $0x64] sm:$0xf]
    %v103 = vld [vmem:[#allocation2 + $0x68] sm:$0xf]
    %v104 = vld [vmem:[#allocation2 + $0x6c] sm:$0xf]
    %v105 = vld [vmem:[#allocation2 + $0x70] sm:$0xf]
    %v106 = vld [vmem:[#allocation2 + $0x74] sm:$0xf]
    %v107 = vld [vmem:[#allocation2 + $0x78] sm:$0xf]
    %v108 = vld [vmem:[#allocation2 + $0x7c] sm:$0xf]
    %v109 = vld [vmem:[#allocation2 + $0x80] sm:$0xf]
    %v110 = vld [vmem:[#allocation2 + $0x84] sm:$0xf]
    %v111 = vld [vmem:[#allocation2 + $0x88] sm:$0xf]
    %v112 = vld [vmem:[#allocation2 + $0x8c] sm:$0xf]
    %v113 = vld [vmem:[#allocation2 + $0x90] sm:$0xf]
    %v114 = vld [vmem:[#allocation2 + $0x94] sm:$0xf]
    %v115 = vld [vmem:[#allocation2 + $0x98] sm:$0xf]
    %v116 = vld [vmem:[#allocation2 + $0x9c] sm:$0xf]
    %v117 = vld [vmem:[#allocation2 + $0xa0] sm:$0xf]
    %v118 = vld [vmem:[#allocation2 + $0xa4] sm:$0xf]
    %v119 = vld [vmem:[#allocation2 + $0xa8] sm:$0xf]
    %v120 = vld [vmem:[#allocation2 + $0xac] sm:$0xf]
    %v121 = vld [vmem:[#allocation2 + $0xb0] sm:$0xf]
    %v122 = vld [vmem:[#allocation2 + $0xb4] sm:$0xf]
    %v123 = vld [vmem:[#allocation2 + $0xb8] sm:$0xf]
    %v124 = vld [vmem:[#allocation2 + $0xbc] sm:$0xf]
    %v125 = vld [vmem:[#allocation2 + $0xc0] sm:$0xf]
    %v126 = vld [vmem:[#allocation2 + $0xc4] sm:$0xf]
    %v127 = vld [vmem:[#allocation2 + $0xc8] sm:$0xf]
    %v128 = vld [vmem:[#allocation2 + $0xcc] sm:$0xf]
    %v129 = vld [vmem:[#allocation2 + $0xd0] sm:$0xf]
    %v130 = vld [vmem:[#allocation2 + $0xd4] sm:$0xf]
    %v131 = vld [vmem:[#allocation2 + $0xd8] sm:$0xf]
    %v132 = vld [vmem:[#allocation2 + $0xdc] sm:$0xf]
    %v133 = vld [vmem:[#allocation2 + $0xe0] sm:$0xf]
    %v134 = vld [vmem:[#allocation2 + $0xe4] sm:$0xf]
    %v135 = vld [vmem:[#allocation2 + $0xe8] sm:$0xf]
    %v136 = vld [vmem:[#allocation2 + $0xec] sm:$0xf]
    %v137 = vld [vmem:[#allocation2 + $0xf0] sm:$0xf]
    %v138 = vld [vmem:[#allocation2 + $0xf4] sm:$0xf]
    %v139 = vld [vmem:[#allocation2 + $0xf8] sm:$0xf]
    %v140 = vld [vmem:[#allocation2 + $0xfc] sm:$0xf]
    %v141 = vld [vmem:[#allocation2 + $0x100] sm:$0xf]
    %v142 = vld [vmem:[#allocation2 + $0x104] sm:$0xf]
    %v143 = vld [vmem:[#allocation2 + $0x108] sm:$0xf]
    %v144 = vld [vmem:[#allocation2 + $0x10c] sm:$0xf]
    %v145 = vld [vmem:[#allocation2 + $0x110] sm:$0xf]
    %v146 = vld [vmem:[#allocation2 + $0x114] sm:$0xf]
    %v147 = vld [vmem:[#allocation2 + $0x118] sm:$0xf]
    %v148 = vld [vmem:[#allocation2 + $0x11c] sm:$0xf]
    %v149 = vld [vmem:[#allocation2 + $0x120] sm:$0xf]
    %v150 = vld [vmem:[#allocation2 + $0x124] sm:$0xf]
    %v151 = vld [vmem:[#allocation2 + $0x128] sm:$0xf]
    %v152 = vld [vmem:[#allocation2 + $0x12c] sm:$0xf]
    %v153 = vld [vmem:[#allocation2 + $0x130] sm:$0xf]
    %v154 = vld [vmem:[#allocation2 + $0x134] sm:$0xf]
    %v155 = vld [vmem:[#allocation2 + $0x138] sm:$0xf]
    %v156 = vld [vmem:[#allocation2 + $0x13c] sm:$0xf]
    %v157 = vld [vmem:[#allocation2 + $0x140] sm:$0xf]
    %v158 = vld [vmem:[#allocation2 + $0x144] sm:$0xf]
    %v159 = vld [vmem:[#allocation2 + $0x148] sm:$0xf]
    %v160 = vld [vmem:[#allocation2 + $0x14c] sm:$0xf]
    %v161 = vld [vmem:[#allocation2 + $0x150] sm:$0xf]
    %v162 = vld [vmem:[#allocation2 + $0x154] sm:$0xf]
    %v163 = vld [vmem:[#allocation2 + $0x158] sm:$0xf]
    %v164 = vld [vmem:[#allocation2 + $0x15c] sm:$0xf]
    %v165 = vld [vmem:[#allocation2 + $0x160] sm:$0xf]
    %v166 = vld [vmem:[#allocation2 + $0x164] sm:$0xf]
    %v167 = vld [vmem:[#allocation2 + $0x168] sm:$0xf]
    %v168 = vld [vmem:[#allocation2 + $0x16c] sm:$0xf]
    %v169 = vld [vmem:[#allocation2 + $0x170] sm:$0xf]
    %v170 = vld [vmem:[#allocation2 + $0x174] sm:$0xf]
    %v171 = vld [vmem:[#allocation2 + $0x178] sm:$0xf]
    %v172 = vld [vmem:[#allocation2 + $0x17c] sm:$0xf]
    %v173 = vld [vmem:[#allocation2 + $0x180] sm:$0xf]
    %v174 = vld [vmem:[#allocation2 + $0x184] sm:$0xf]
    %v175 = vld [vmem:[#allocation2 + $0x188] sm:$0xf]
    %v176 = vld [vmem:[#allocation2 + $0x18c] sm:$0xf]
    %v177 = vld [vmem:[#allocation2 + $0x190] sm:$0xf]
    %v178 = vld [vmem:[#allocation2 + $0x194] sm:$0xf]
    %v179 = vld [vmem:[#allocation2 + $0x198] sm:$0xf]
    %v180 = vld [vmem:[#allocation2 + $0x19c] sm:$0xf]
    %v181 = vld [vmem:[#allocation2 + $0x1a0] sm:$0xf]
    %v182 = vld [vmem:[#allocation2 + $0x1a4] sm:$0xf]
    %v183 = vld [vmem:[#allocation2 + $0x1a8] sm:$0xf]
    %v184 = vld [vmem:[#allocation2 + $0x1ac] sm:$0xf]
    %v185 = vld [vmem:[#allocation2 + $0x1b0] sm:$0xf]
    %v186 = vld [vmem:[#allocation2 + $0x1b4] sm:$0xf]
    %v187 = vld [vmem:[#allocation2 + $0x1b8] sm:$0xf]
    %v188 = vld [vmem:[#allocation2 + $0x1bc] sm:$0xf]
    %v189 = vld [vmem:[#allocation2 + $0x1c0] sm:$0xf]
    %v190 = vld [vmem:[#allocation2 + $0x1c4] sm:$0xf]
    %v191 = vld [vmem:[#allocation2 + $0x1c8] sm:$0xf]
    %v192 = vld [vmem:[#allocation2 + $0x1cc] sm:$0xf]
    %v193 = vld [vmem:[#allocation2 + $0x1d0] sm:$0xf]
    %v194 = vld [vmem:[#allocation2 + $0x1d4] sm:$0xf]
    %v195 = vld [vmem:[#allocation2 + $0x1d8] sm:$0xf]
    %v196 = vld [vmem:[#allocation2 + $0x1dc] sm:$0xf]
    %v197 = vld [vmem:[#allocation2 + $0x1e0] sm:$0xf]
    %v198 = vld [vmem:[#allocation2 + $0x1e4] sm:$0xf]
    %v199 = vld [vmem:[#allocation2 + $0x1e8] sm:$0xf]
    %v200 = vld [vmem:[#allocation2 + $0x1ec] sm:$0xf]
    %v201 = vld [vmem:[#allocation2 + $0x1f0] sm:$0xf]
    %v202 = vld [vmem:[#allocation2 + $0x1f4] sm:$0xf]
    %v203 = vld [vmem:[#allocation2 + $0x1f8] sm:$0xf]
    %v204 = vld [vmem:[#allocation2 + $0x1fc] sm:$0xf]
    %v205 = vld [vmem:[%s2] sm:$0x1]
    %v207 = vlaneseq
    %v208 = vshrl.u32 %v207, 7
    %v209 = vsub.s32 0, %v208
    %v210 = vrot.slane %v205, %v209
    %v220 = vunpack.c.l.b16 %v69
    %v221 = vunpack.c.h.b16 %v69
    %v222 = vunpack.c.l.b16 %v70
    %v223 = vunpack.c.h.b16 %v70
    %v224 = vunpack.c.l.b16 %v71
    %v225 = vunpack.c.h.b16 %v71
    %v226 = vunpack.c.l.b16 %v72
    %v227 = vunpack.c.h.b16 %v72
    %v228 = vunpack.c.l.b16 %v73
    %v229 = vunpack.c.h.b16 %v73
    %v230 = vunpack.c.l.b16 %v74
    %v231 = vunpack.c.h.b16 %v74
    %v232 = vunpack.c.l.b16 %v75
    %v233 = vunpack.c.h.b16 %v75
    %v234 = vunpack.c.l.b16 %v76
    %v235 = vunpack.c.h.b16 %v76
    %v236 = vpack.c.b16 %v228, %v220
    %v237 = vpack.c.b16 %v229, %v221
    %v238 = vpack.c.b16 %v230, %v222
    %v239 = vpack.c.b16 %v231, %v223
    %v240 = vpack.c.b16 %v232, %v224
    %v241 = vpack.c.b16 %v233, %v225
    %v242 = vpack.c.b16 %v234, %v226
    %v243 = vpack.c.b16 %v235, %v227
    %v380 = vunpack.c.l.b16 %v77
    %v381 = vunpack.c.l.b16 %v78
    %v382 = vunpack.c.l.b16 %v79
    %v383 = vunpack.c.l.b16 %v80
    %v384 = vunpack.c.l.b16 %v81
    %v385 = vunpack.c.l.b16 %v82
    %v386 = vunpack.c.l.b16 %v83
    %v387 = vunpack.c.l.b16 %v84
    %v388 = vunpack.c.l.b16 %v85
    %v389 = vunpack.c.l.b16 %v86
    %v390 = vunpack.c.l.b16 %v87
    %v391 = vunpack.c.l.b16 %v88
    %v392 = vunpack.c.l.b16 %v89
    %v393 = vunpack.c.l.b16 %v90
    %v394 = vunpack.c.l.b16 %v91
    %v395 = vunpack.c.l.b16 %v92
    %v396 = vunpack.c.l.b16 %v93
    %v397 = vunpack.c.l.b16 %v94
    %v398 = vunpack.c.l.b16 %v95
    %v399 = vunpack.c.l.b16 %v96
    %v400 = vunpack.c.l.b16 %v97
    %v401 = vunpack.c.l.b16 %v98
    %v402 = vunpack.c.l.b16 %v99
    %v403 = vunpack.c.l.b16 %v100
    %v404 = vunpack.c.l.b16 %v101
    %v405 = vunpack.c.l.b16 %v102
    %v406 = vunpack.c.l.b16 %v103
    %v407 = vunpack.c.l.b16 %v104
    %v408 = vunpack.c.l.b16 %v105
    %v409 = vunpack.c.l.b16 %v106
    %v410 = vunpack.c.l.b16 %v107
    %v411 = vunpack.c.l.b16 %v108
    %v412 = vunpack.c.l.b16 %v109
    %v413 = vunpack.c.l.b16 %v110
    %v414 = vunpack.c.l.b16 %v111
    %v415 = vunpack.c.l.b16 %v112
    %v416 = vunpack.c.l.b16 %v113
    %v417 = vunpack.c.l.b16 %v114
    %v418 = vunpack.c.l.b16 %v115
    %v419 = vunpack.c.l.b16 %v116
    %v420 = vunpack.c.l.b16 %v117
    %v421 = vunpack.c.l.b16 %v118
    %v422 = vunpack.c.l.b16 %v119
    %v423 = vunpack.c.l.b16 %v120
    %v424 = vunpack.c.l.b16 %v121
    %v425 = vunpack.c.l.b16 %v122
    %v426 = vunpack.c.l.b16 %v123
    %v427 = vunpack.c.l.b16 %v124
    %v428 = vunpack.c.l.b16 %v125
    %v429 = vunpack.c.l.b16 %v126
    %v430 = vunpack.c.l.b16 %v127
    %v431 = vunpack.c.l.b16 %v128
    %v432 = vunpack.c.l.b16 %v129
    %v433 = vunpack.c.l.b16 %v130
    %v434 = vunpack.c.l.b16 %v131
    %v435 = vunpack.c.l.b16 %v132
    %v436 = vunpack.c.l.b16 %v133
    %v437 = vunpack.c.l.b16 %v134
    %v438 = vunpack.c.l.b16 %v135
    %v439 = vunpack.c.l.b16 %v136
    %v440 = vunpack.c.l.b16 %v137
    %v441 = vunpack.c.l.b16 %v138
    %v442 = vunpack.c.l.b16 %v139
    %v443 = vunpack.c.l.b16 %v140
    %v444 = vunpack.c.l.b16 %v141
    %v445 = vunpack.c.l.b16 %v142
    %v446 = vunpack.c.l.b16 %v143
    %v447 = vunpack.c.l.b16 %v144
    %v448 = vunpack.c.l.b16 %v145
    %v449 = vunpack.c.l.b16 %v146
    %v450 = vunpack.c.l.b16 %v147
    %v451 = vunpack.c.l.b16 %v148
    %v452 = vunpack.c.l.b16 %v149
    %v453 = vunpack.c.l.b16 %v150
    %v454 = vunpack.c.l.b16 %v151
    %v455 = vunpack.c.l.b16 %v152
    %v456 = vunpack.c.l.b16 %v153
    %v457 = vunpack.c.l.b16 %v154
    %v458 = vunpack.c.l.b16 %v155
    %v459 = vunpack.c.l.b16 %v156
    %v460 = vunpack.c.l.b16 %v157
    %v461 = vunpack.c.l.b16 %v158
    %v462 = vunpack.c.l.b16 %v159
    %v463 = vunpack.c.l.b16 %v160
    %v464 = vunpack.c.l.b16 %v161
    %v465 = vunpack.c.l.b16 %v162
    %v466 = vunpack.c.l.b16 %v163
    %v467 = vunpack.c.l.b16 %v164
    %v468 = vunpack.c.l.b16 %v165
    %v469 = vunpack.c.l.b16 %v166
    %v470 = vunpack.c.l.b16 %v167
    %v471 = vunpack.c.l.b16 %v168
    %v472 = vunpack.c.l.b16 %v169
    %v473 = vunpack.c.l.b16 %v170
    %v474 = vunpack.c.l.b16 %v171
    %v475 = vunpack.c.l.b16 %v172
    %v476 = vunpack.c.l.b16 %v173
    %v477 = vunpack.c.l.b16 %v174
    %v478 = vunpack.c.l.b16 %v175
    %v479 = vunpack.c.l.b16 %v176
    %v480 = vunpack.c.l.b16 %v177
    %v481 = vunpack.c.l.b16 %v178
    %v482 = vunpack.c.l.b16 %v179
    %v483 = vunpack.c.l.b16 %v180
    %v484 = vunpack.c.l.b16 %v181
    %v485 = vunpack.c.l.b16 %v182
    %v486 = vunpack.c.l.b16 %v183
    %v487 = vunpack.c.l.b16 %v184
    %v488 = vunpack.c.l.b16 %v185
    %v489 = vunpack.c.l.b16 %v186
    %v490 = vunpack.c.l.b16 %v187
    %v491 = vunpack.c.l.b16 %v188
    %v492 = vunpack.c.l.b16 %v189
    %v493 = vunpack.c.l.b16 %v190
    %v494 = vunpack.c.l.b16 %v191
    %v495 = vunpack.c.l.b16 %v192
    %v496 = vunpack.c.l.b16 %v193
    %v497 = vunpack.c.l.b16 %v194
    %v498 = vunpack.c.l.b16 %v195
    %v499 = vunpack.c.l.b16 %v196
    %v500 = vunpack.c.l.b16 %v197
    %v501 = vunpack.c.l.b16 %v198
    %v502 = vunpack.c.l.b16 %v199
    %v503 = vunpack.c.l.b16 %v200
    %v504 = vunpack.c.l.b16 %v201
    %v505 = vunpack.c.l.b16 %v202
    %v506 = vunpack.c.l.b16 %v203
    %v507 = vunpack.c.l.b16 %v204
    %v508 = vpack.c.b16 %v381, %v380
    %v509 = vpack.c.b16 %v383, %v382
    %v510 = vpack.c.b16 %v385, %v384
    %v511 = vpack.c.b16 %v387, %v386
    %v512 = vpack.c.b16 %v389, %v388
    %v513 = vpack.c.b16 %v391, %v390
    %v514 = vpack.c.b16 %v393, %v392
    %v515 = vpack.c.b16 %v395, %v394
    %v516 = vpack.c.b16 %v397, %v396
    %v517 = vpack.c.b16 %v399, %v398
    %v518 = vpack.c.b16 %v401, %v400
    %v519 = vpack.c.b16 %v403, %v402
    %v520 = vpack.c.b16 %v405, %v404
    %v521 = vpack.c.b16 %v407, %v406
    %v522 = vpack.c.b16 %v409, %v408
    %v523 = vpack.c.b16 %v411, %v410
    %v524 = vpack.c.b16 %v413, %v412
    %v525 = vpack.c.b16 %v415, %v414
    %v526 = vpack.c.b16 %v417, %v416
    %v527 = vpack.c.b16 %v419, %v418
    %v528 = vpack.c.b16 %v421, %v420
    %v529 = vpack.c.b16 %v423, %v422
    %v530 = vpack.c.b16 %v425, %v424
    %v531 = vpack.c.b16 %v427, %v426
    %v532 = vpack.c.b16 %v429, %v428
    %v533 = vpack.c.b16 %v431, %v430
    %v534 = vpack.c.b16 %v433, %v432
    %v535 = vpack.c.b16 %v435, %v434
    %v536 = vpack.c.b16 %v437, %v436
    %v537 = vpack.c.b16 %v439, %v438
    %v538 = vpack.c.b16 %v441, %v440
    %v539 = vpack.c.b16 %v443, %v442
    %v540 = vpack.c.b16 %v445, %v444
    %v541 = vpack.c.b16 %v447, %v446
    %v542 = vpack.c.b16 %v449, %v448
    %v543 = vpack.c.b16 %v451, %v450
    %v544 = vpack.c.b16 %v453, %v452
    %v545 = vpack.c.b16 %v455, %v454
    %v546 = vpack.c.b16 %v457, %v456
    %v547 = vpack.c.b16 %v459, %v458
    %v548 = vpack.c.b16 %v461, %v460
    %v549 = vpack.c.b16 %v463, %v462
    %v550 = vpack.c.b16 %v465, %v464
    %v551 = vpack.c.b16 %v467, %v466
    %v552 = vpack.c.b16 %v469, %v468
    %v553 = vpack.c.b16 %v471, %v470
    %v554 = vpack.c.b16 %v473, %v472
    %v555 = vpack.c.b16 %v475, %v474
    %v556 = vpack.c.b16 %v477, %v476
    %v557 = vpack.c.b16 %v479, %v478
    %v558 = vpack.c.b16 %v481, %v480
    %v559 = vpack.c.b16 %v483, %v482
    %v560 = vpack.c.b16 %v485, %v484
    %v561 = vpack.c.b16 %v487, %v486
    %v562 = vpack.c.b16 %v489, %v488
    %v563 = vpack.c.b16 %v491, %v490
    %v564 = vpack.c.b16 %v493, %v492
    %v565 = vpack.c.b16 %v495, %v494
    %v566 = vpack.c.b16 %v497, %v496
    %v567 = vpack.c.b16 %v499, %v498
    %v568 = vpack.c.b16 %v501, %v500
    %v569 = vpack.c.b16 %v503, %v502
    %v570 = vpack.c.b16 %v505, %v504
    %v571 = vpack.c.b16 %v507, %v506
    %636 = vmatprep.subr.bf16.mxu0 0
    %637 = vmatpush1.bf16.msra.mxu0 %v515
    %638 = vmatprep.subr.bf16.mxu0 0
    %639 = vmatpush1.bf16.msra.mxu0 %v514
    %640 = vmatprep.subr.bf16.mxu0 0
    %641 = vmatpush1.bf16.msra.mxu0 %v513
    %642 = vmatprep.subr.bf16.mxu0 0
    %643 = vmatpush1.bf16.msra.mxu0 %v512
    %644 = vmatprep.subr.bf16.mxu0 0
    %645 = vmatpush1.bf16.msra.mxu0 %v511
    %646 = vmatprep.subr.bf16.mxu0 0
    %647 = vmatpush1.bf16.msra.mxu0 %v510
    %648 = vmatprep.subr.bf16.mxu0 0
    %649 = vmatpush1.bf16.msra.mxu0 %v509
    %650 = vmatprep.subr.bf16.mxu0 0
    %651 = vmatpush1.bf16.msra.mxu0 %v508
    %652 = vmatprep.subr.bf16.mxu0 0
    %653 = vmatpush2.bf16.msra.mxu0 %v523
    %654 = vmatprep.subr.bf16.mxu0 0
    %655 = vmatpush2.bf16.msra.mxu0 %v522
    %656 = vmatprep.subr.bf16.mxu0 0
    %657 = vmatpush2.bf16.msra.mxu0 %v521
    %658 = vmatprep.subr.bf16.mxu0 0
    %659 = vmatpush2.bf16.msra.mxu0 %v520
    %660 = vmatprep.subr.bf16.mxu0 0
    %661 = vmatpush2.bf16.msra.mxu0 %v519
    %662 = vmatprep.subr.bf16.mxu0 0
    %663 = vmatpush2.bf16.msra.mxu0 %v518
    %664 = vmatprep.subr.bf16.mxu0 0
    %665 = vmatpush2.bf16.msra.mxu0 %v517
    %666 = vmatprep.subr.bf16.mxu0 0
    %667 = vmatpush2.bf16.msra.mxu0 %v516
    %668 = vmatprep.mubr.bf16.mxu0 %v237
    %669 = vmatmul.mubr.bf16.gmra.mxu0 %v236
    %v670 = vpop.f32.mrf.mxu0
    %v671 = vadd.f32 %v210, %v670
    %v672 = vpop.f32.mrf.mxu0
    %v673 = vpop.f32.mrf.mxu0
    %v674 = vadd.f32 %v210, %v673
    %v675 = vpop.f32.mrf.mxu0
    %676 = vdwg.mxu0
    %677 = vmatprep.subr.bf16.mxu0 0
    %678 = vmatpush1.bf16.msra.mxu0 %v531
    %679 = vmatprep.subr.bf16.mxu0 0
    %680 = vmatpush1.bf16.msra.mxu0 %v530
    %681 = vmatprep.subr.bf16.mxu0 0
    %682 = vmatpush1.bf16.msra.mxu0 %v529
    %683 = vmatprep.subr.bf16.mxu0 0
    %684 = vmatpush1.bf16.msra.mxu0 %v528
    %685 = vmatprep.subr.bf16.mxu0 0
    %686 = vmatpush1.bf16.msra.mxu0 %v527
    %687 = vmatprep.subr.bf16.mxu0 0
    %688 = vmatpush1.bf16.msra.mxu0 %v526
    %689 = vmatprep.subr.bf16.mxu0 0
    %690 = vmatpush1.bf16.msra.mxu0 %v525
    %691 = vmatprep.subr.bf16.mxu0 0
    %692 = vmatpush1.bf16.msra.mxu0 %v524
    %693 = vmatprep.subr.bf16.mxu0 0
    %694 = vmatpush2.bf16.msra.mxu0 %v539
    %695 = vmatprep.subr.bf16.mxu0 0
    %696 = vmatpush2.bf16.msra.mxu0 %v538
    %697 = vmatprep.subr.bf16.mxu0 0
    %698 = vmatpush2.bf16.msra.mxu0 %v537
    %699 = vmatprep.subr.bf16.mxu0 0
    %700 = vmatpush2.bf16.msra.mxu0 %v536
    %701 = vmatprep.subr.bf16.mxu0 0
    %702 = vmatpush2.bf16.msra.mxu0 %v535
    %703 = vmatprep.subr.bf16.mxu0 0
    %704 = vmatpush2.bf16.msra.mxu0 %v534
    %705 = vmatprep.subr.bf16.mxu0 0
    %706 = vmatpush2.bf16.msra.mxu0 %v533
    %707 = vmatprep.subr.bf16.mxu0 0
    %708 = vmatpush2.bf16.msra.mxu0 %v532
    %709 = vmatprep.mubr.bf16.mxu0 %v239
    %710 = vmatmul.mubr.bf16.gmra.mxu0 %v238
    %v711 = vpop.f32.mrf.mxu0
    %v712 = vadd.f32 %v671, %v711
    %v713 = vpop.f32.mrf.mxu0
    %v714 = vpop.f32.mrf.mxu0
    %v715 = vadd.f32 %v674, %v714
    %v716 = vpop.f32.mrf.mxu0
    %717 = vdwg.mxu0
    %718 = vmatprep.subr.bf16.mxu0 0
    %719 = vmatpush1.bf16.msra.mxu0 %v547
    %720 = vmatprep.subr.bf16.mxu0 0
    %721 = vmatpush1.bf16.msra.mxu0 %v546
    %722 = vmatprep.subr.bf16.mxu0 0
    %723 = vmatpush1.bf16.msra.mxu0 %v545
    %724 = vmatprep.subr.bf16.mxu0 0
    %725 = vmatpush1.bf16.msra.mxu0 %v544
    %726 = vmatprep.subr.bf16.mxu0 0
    %727 = vmatpush1.bf16.msra.mxu0 %v543
    %728 = vmatprep.subr.bf16.mxu0 0
    %729 = vmatpush1.bf16.msra.mxu0 %v542
    %730 = vmatprep.subr.bf16.mxu0 0
    %731 = vmatpush1.bf16.msra.mxu0 %v541
    %732 = vmatprep.subr.bf16.mxu0 0
    %733 = vmatpush1.bf16.msra.mxu0 %v540
    %734 = vmatprep.subr.bf16.mxu0 0
    %735 = vmatpush2.bf16.msra.mxu0 %v555
    %736 = vmatprep.subr.bf16.mxu0 0
    %737 = vmatpush2.bf16.msra.mxu0 %v554
    %738 = vmatprep.subr.bf16.mxu0 0
    %739 = vmatpush2.bf16.msra.mxu0 %v553
    %740 = vmatprep.subr.bf16.mxu0 0
    %741 = vmatpush2.bf16.msra.mxu0 %v552
    %742 = vmatprep.subr.bf16.mxu0 0
    %743 = vmatpush2.bf16.msra.mxu0 %v551
    %744 = vmatprep.subr.bf16.mxu0 0
    %745 = vmatpush2.bf16.msra.mxu0 %v550
    %746 = vmatprep.subr.bf16.mxu0 0
    %747 = vmatpush2.bf16.msra.mxu0 %v549
    %748 = vmatprep.subr.bf16.mxu0 0
    %749 = vmatpush2.bf16.msra.mxu0 %v548
    %750 = vmatprep.mubr.bf16.mxu0 %v241
    %751 = vmatmul.mubr.bf16.gmra.mxu0 %v240
    %v752 = vpop.f32.mrf.mxu0
    %v753 = vadd.f32 %v712, %v752
    %v754 = vpop.f32.mrf.mxu0
    %v755 = vpop.f32.mrf.mxu0
    %v756 = vadd.f32 %v715, %v755
    %v757 = vpop.f32.mrf.mxu0
    %758 = vdwg.mxu0
    %759 = vmatprep.subr.bf16.mxu0 0
    %760 = vmatpush1.bf16.msra.mxu0 %v563
    %761 = vmatprep.subr.bf16.mxu0 0
    %762 = vmatpush1.bf16.msra.mxu0 %v562
    %763 = vmatprep.subr.bf16.mxu0 0
    %764 = vmatpush1.bf16.msra.mxu0 %v561
    %765 = vmatprep.subr.bf16.mxu0 0
    %766 = vmatpush1.bf16.msra.mxu0 %v560
    %767 = vmatprep.subr.bf16.mxu0 0
    %768 = vmatpush1.bf16.msra.mxu0 %v559
    %769 = vmatprep.subr.bf16.mxu0 0
    %770 = vmatpush1.bf16.msra.mxu0 %v558
    %771 = vmatprep.subr.bf16.mxu0 0
    %772 = vmatpush1.bf16.msra.mxu0 %v557
    %773 = vmatprep.subr.bf16.mxu0 0
    %774 = vmatpush1.bf16.msra.mxu0 %v556
    %775 = vmatprep.subr.bf16.mxu0 0
    %776 = vmatpush2.bf16.msra.mxu0 %v571
    %777 = vmatprep.subr.bf16.mxu0 0
    %778 = vmatpush2.bf16.msra.mxu0 %v570
    %779 = vmatprep.subr.bf16.mxu0 0
    %780 = vmatpush2.bf16.msra.mxu0 %v569
    %781 = vmatprep.subr.bf16.mxu0 0
    %782 = vmatpush2.bf16.msra.mxu0 %v568
    %783 = vmatprep.subr.bf16.mxu0 0
    %784 = vmatpush2.bf16.msra.mxu0 %v567
    %785 = vmatprep.subr.bf16.mxu0 0
    %786 = vmatpush2.bf16.msra.mxu0 %v566
    %787 = vmatprep.subr.bf16.mxu0 0
    %788 = vmatpush2.bf16.msra.mxu0 %v565
    %789 = vmatprep.subr.bf16.mxu0 0
    %790 = vmatpush2.bf16.msra.mxu0 %v564
    %791 = vmatprep.mubr.bf16.mxu0 %v243
    %792 = vmatmul.mubr.bf16.gmra.mxu0 %v242
    %v793 = vpop.f32.mrf.mxu0
    %v794 = vadd.f32 %v753, %v793
    %v795 = vpop.f32.mrf.mxu0
    %v796 = vpop.f32.mrf.mxu0
    %v797 = vadd.f32 %v756, %v796
    %v798 = vpop.f32.mrf.mxu0
    %799 = vdwg.mxu0
    %v800 = vmax.f32 %v794, 0.0
    %v801 = vmax.f32 %v797, 0.0
    %802 = vadd.xlane.f32.xlu0 %v800
    %v803 = vpop.xlane.xlu0 %802
    %804 = vadd.xlane.f32.xlu0 %v801
    %v805 = vpop.xlane.xlu0 %804
    %v806 = vmul.f32 %v803, 0.0078125
    %v807 = vmul.f32 %v805, 0.0078125
    %v808 = vmul.f32 %v800, %v800
    %v809 = vmul.f32 %v801, %v801
    %810 = vadd.xlane.f32.xlu0 %v808
    %v811 = vpop.xlane.xlu0 %810
    %812 = vadd.xlane.f32.xlu0 %v809
    %v813 = vpop.xlane.xlu0 %812
    %v814 = vmul.f32 %v811, 0.0078125
    %v815 = vmul.f32 %v813, 0.0078125
    %v816 = vmul.f32 %v806, %v806
    %v817 = vmul.f32 %v807, %v807
    %v818 = vsub.f32 %v814, %v816
    %v819 = vsub.f32 %v815, %v817
    %v820 = vsub.f32 %v800, %v806
    %v821 = vsub.f32 %v801, %v807
    %v822 = vadd.f32 %v818, 1e-05
    %v823 = vadd.f32 %v819, 1e-05
    %v824 = vrsqrt.pop %v822
    %v825 = vrsqrt.pop %v823
    %v826 = vmul.f32 %v820, %v824
    %v827 = vmul.f32 %v821, %v825
    %v828 = vld [vmem:[%s3] sm:$0x1]
    %v830 = vlaneseq
    %v831 = vshrl.u32 %v830, 7
    %v832 = vsub.s32 0, %v831
    %v833 = vrot.slane %v828, %v832
    %v835 = vmul.f32 %v826, %v833
    %v836 = vmul.f32 %v827, %v833
    %v837 = vld [vmem:[%s4] sm:$0x1]
    %v839 = vlaneseq
    %v840 = vshrl.u32 %v839, 7
    %v841 = vsub.s32 0, %v840
    %v842 = vrot.slane %v837, %v841
    %v844 = vadd.f32 %v835, %v842
    %v845 = vadd.f32 %v836, %v842
    %v846 = vlaneseq
    %v847 = vshrl.u32 %v846, 7
    %v848 = vadd.s32 %v847, 8
    %v849 = vand.u32 %v847, 7
    %v850 = vand.u32 %v848, 7
    %vm851 = vcmp.ne.s32.totalorder %v849, 0
    %vm852 = vcmp.ne.s32.totalorder %v850, 0
    %v853 = vsel %vm851, 1, 0
    %v854 = vsel %vm852, 1, 0
    %v855 = vcvt.s32.f32 %v853
    %v856 = vcvt.s32.f32 %v854
    %vm857 = vcmp.ne.s32.totalorder %v849, 7
    %vm858 = vcmp.ne.s32.totalorder %v850, 7
    %v859 = vsel %vm857, 1, 0
    %v860 = vsel %vm858, 1, 0
    %v861 = vcvt.s32.f32 %v859
    %v862 = vcvt.s32.f32 %v860
    %v863 = vrot.slane %v844, 7
    %v864 = vrot.slane %v845, 7
    %vm865 = vcmp.lt.s32.totalorder %v847, 1
    %v866 = vsel %vm865, %v863, %v864
    %v867 = vsel %vm865, %v864, %v863
    %v868 = vmul.f32 %v867, %v855
    %v869 = vmul.f32 %v866, %v856
    %v870 = vrot.slane %v844, 1
    %v871 = vrot.slane %v845, 1
    %vm872 = vcmp.lt.s32.totalorder %v847, 7
    %v873 = vsel %vm872, %v870, %v871
    %v874 = vsel %vm872, %v871, %v870
    %v875 = vmul.f32 %v873, %v861
    %v876 = vmul.f32 %v874, %v862
    %v877 = vpack.c.bf16 %v845, %v844
    %v878 = vpack.c.bf16 %v869, %v868
    %v879 = vpack.c.bf16 %v876, %v875
    %v880 = vld [vmem:[#allocation4] sm:$0xf]
    %v881 = vld [vmem:[#allocation4 + $0x4] sm:$0xf]
    %v882 = vld [vmem:[#allocation4 + $0x8] sm:$0xf]
    %v883 = vld [vmem:[#allocation4 + $0xc] sm:$0xf]
    %v884 = vld [vmem:[#allocation4 + $0x10] sm:$0xf]
    %v885 = vld [vmem:[#allocation4 + $0x14] sm:$0xf]
    %v886 = vld [vmem:[#allocation4 + $0x18] sm:$0xf]
    %v887 = vld [vmem:[#allocation4 + $0x1c] sm:$0xf]
    %v888 = vld [vmem:[#allocation4 + $0x20] sm:$0xf]
    %v889 = vld [vmem:[#allocation4 + $0x24] sm:$0xf]
    %v890 = vld [vmem:[#allocation4 + $0x28] sm:$0xf]
    %v891 = vld [vmem:[#allocation4 + $0x2c] sm:$0xf]
    %v892 = vld [vmem:[#allocation4 + $0x30] sm:$0xf]
    %v893 = vld [vmem:[#allocation4 + $0x34] sm:$0xf]
    %v894 = vld [vmem:[#allocation4 + $0x38] sm:$0xf]
    %v895 = vld [vmem:[#allocation4 + $0x3c] sm:$0xf]
    %v896 = vld [vmem:[#allocation4 + $0x40] sm:$0xf]
    %v897 = vld [vmem:[#allocation4 + $0x44] sm:$0xf]
    %v898 = vld [vmem:[#allocation4 + $0x48] sm:$0xf]
    %v899 = vld [vmem:[#allocation4 + $0x4c] sm:$0xf]
    %v900 = vld [vmem:[#allocation4 + $0x50] sm:$0xf]
    %v901 = vld [vmem:[#allocation4 + $0x54] sm:$0xf]
    %v902 = vld [vmem:[#allocation4 + $0x58] sm:$0xf]
    %v903 = vld [vmem:[#allocation4 + $0x5c] sm:$0xf]
    %v904 = vld [vmem:[#allocation4 + $0x60] sm:$0xf]
    %v905 = vld [vmem:[#allocation4 + $0x64] sm:$0xf]
    %v906 = vld [vmem:[#allocation4 + $0x68] sm:$0xf]
    %v907 = vld [vmem:[#allocation4 + $0x6c] sm:$0xf]
    %v908 = vld [vmem:[#allocation4 + $0x70] sm:$0xf]
    %v909 = vld [vmem:[#allocation4 + $0x74] sm:$0xf]
    %v910 = vld [vmem:[#allocation4 + $0x78] sm:$0xf]
    %v911 = vld [vmem:[#allocation4 + $0x7c] sm:$0xf]
    %v912 = vld [vmem:[#allocation4 + $0x80] sm:$0xf]
    %v913 = vld [vmem:[#allocation4 + $0x84] sm:$0xf]
    %v914 = vld [vmem:[#allocation4 + $0x88] sm:$0xf]
    %v915 = vld [vmem:[#allocation4 + $0x8c] sm:$0xf]
    %v916 = vld [vmem:[#allocation4 + $0x90] sm:$0xf]
    %v917 = vld [vmem:[#allocation4 + $0x94] sm:$0xf]
    %v918 = vld [vmem:[#allocation4 + $0x98] sm:$0xf]
    %v919 = vld [vmem:[#allocation4 + $0x9c] sm:$0xf]
    %v920 = vld [vmem:[#allocation4 + $0xa0] sm:$0xf]
    %v921 = vld [vmem:[#allocation4 + $0xa4] sm:$0xf]
    %v922 = vld [vmem:[#allocation4 + $0xa8] sm:$0xf]
    %v923 = vld [vmem:[#allocation4 + $0xac] sm:$0xf]
    %v924 = vld [vmem:[#allocation4 + $0xb0] sm:$0xf]
    %v925 = vld [vmem:[#allocation4 + $0xb4] sm:$0xf]
    %v926 = vld [vmem:[#allocation4 + $0xb8] sm:$0xf]
    %v927 = vld [vmem:[#allocation4 + $0xbc] sm:$0xf]
    %v928 = vld [vmem:[%s6] sm:$0x1]
    %v930 = vlaneseq
    %v931 = vshrl.u32 %v930, 7
    %v932 = vsub.s32 0, %v931
    %v933 = vrot.slane %v928, %v932
    %v983 = vunpack.c.l.b16 %v880
    %v984 = vunpack.c.l.b16 %v881
    %v985 = vunpack.c.l.b16 %v882
    %v986 = vunpack.c.l.b16 %v883
    %v987 = vunpack.c.l.b16 %v884
    %v988 = vunpack.c.l.b16 %v885
    %v989 = vunpack.c.l.b16 %v886
    %v990 = vunpack.c.l.b16 %v887
    %v991 = vunpack.c.l.b16 %v888
    %v992 = vunpack.c.l.b16 %v889
    %v993 = vunpack.c.l.b16 %v890
    %v994 = vunpack.c.l.b16 %v891
    %v995 = vunpack.c.l.b16 %v892
    %v996 = vunpack.c.l.b16 %v893
    %v997 = vunpack.c.l.b16 %v894
    %v998 = vunpack.c.l.b16 %v895
    %v999 = vunpack.c.l.b16 %v896
    %v1000 = vunpack.c.l.b16 %v897
    %v1001 = vunpack.c.l.b16 %v898
    %v1002 = vunpack.c.l.b16 %v899
    %v1003 = vunpack.c.l.b16 %v900
    %v1004 = vunpack.c.l.b16 %v901
    %v1005 = vunpack.c.l.b16 %v902
    %v1006 = vunpack.c.l.b16 %v903
    %v1007 = vunpack.c.l.b16 %v904
    %v1008 = vunpack.c.l.b16 %v905
    %v1009 = vunpack.c.l.b16 %v906
    %v1010 = vunpack.c.l.b16 %v907
    %v1011 = vunpack.c.l.b16 %v908
    %v1012 = vunpack.c.l.b16 %v909
    %v1013 = vunpack.c.l.b16 %v910
    %v1014 = vunpack.c.l.b16 %v911
    %v1015 = vunpack.c.l.b16 %v912
    %v1016 = vunpack.c.l.b16 %v913
    %v1017 = vunpack.c.l.b16 %v914
    %v1018 = vunpack.c.l.b16 %v915
    %v1019 = vunpack.c.l.b16 %v916
    %v1020 = vunpack.c.l.b16 %v917
    %v1021 = vunpack.c.l.b16 %v918
    %v1022 = vunpack.c.l.b16 %v919
    %v1023 = vunpack.c.l.b16 %v920
    %v1024 = vunpack.c.l.b16 %v921
    %v1025 = vunpack.c.l.b16 %v922
    %v1026 = vunpack.c.l.b16 %v923
    %v1027 = vunpack.c.l.b16 %v924
    %v1028 = vunpack.c.l.b16 %v925
    %v1029 = vunpack.c.l.b16 %v926
    %v1030 = vunpack.c.l.b16 %v927
    %v1031 = vpack.c.b16 %v984, %v983
    %v1032 = vpack.c.b16 %v986, %v985
    %v1033 = vpack.c.b16 %v988, %v987
    %v1034 = vpack.c.b16 %v990, %v989
    %v1035 = vpack.c.b16 %v992, %v991
    %v1036 = vpack.c.b16 %v994, %v993
    %v1037 = vpack.c.b16 %v996, %v995
    %v1038 = vpack.c.b16 %v998, %v997
    %v1039 = vpack.c.b16 %v1000, %v999
    %v1040 = vpack.c.b16 %v1002, %v1001
    %v1041 = vpack.c.b16 %v1004, %v1003
    %v1042 = vpack.c.b16 %v1006, %v1005
    %v1043 = vpack.c.b16 %v1008, %v1007
    %v1044 = vpack.c.b16 %v1010, %v1009
    %v1045 = vpack.c.b16 %v1012, %v1011
    %v1046 = vpack.c.b16 %v1014, %v1013
    %v1047 = vpack.c.b16 %v1016, %v1015
    %v1048 = vpack.c.b16 %v1018, %v1017
    %v1049 = vpack.c.b16 %v1020, %v1019
    %v1050 = vpack.c.b16 %v1022, %v1021
    %v1051 = vpack.c.b16 %v1024, %v1023
    %v1052 = vpack.c.b16 %v1026, %v1025
    %v1053 = vpack.c.b16 %v1028, %v1027
    %v1054 = vpack.c.b16 %v1030, %v1029
    %1079 = vmatprep.subr.bf16.mxu0 0
    %1080 = vmatpush1.bf16.msra.mxu0 %v1038
    %1081 = vmatprep.subr.bf16.mxu0 0
    %1082 = vmatpush1.bf16.msra.mxu0 %v1037
    %1083 = vmatprep.subr.bf16.mxu0 0
    %1084 = vmatpush1.bf16.msra.mxu0 %v1036
    %1085 = vmatprep.subr.bf16.mxu0 0
    %1086 = vmatpush1.bf16.msra.mxu0 %v1035
    %1087 = vmatprep.subr.bf16.mxu0 0
    %1088 = vmatpush1.bf16.msra.mxu0 %v1034
    %1089 = vmatprep.subr.bf16.mxu0 0
    %1090 = vmatpush1.bf16.msra.mxu0 %v1033
    %1091 = vmatprep.subr.bf16.mxu0 0
    %1092 = vmatpush1.bf16.msra.mxu0 %v1032
    %1093 = vmatprep.subr.bf16.mxu0 0
    %1094 = vmatpush1.bf16.msra.mxu0 %v1031
    %1095 = vmatprep.subr.bf16.mxu0 0
    %1096 = vmatpush2.bf16.msra.mxu0 %v1046
    %1097 = vmatprep.subr.bf16.mxu0 0
    %1098 = vmatpush2.bf16.msra.mxu0 %v1045
    %1099 = vmatprep.subr.bf16.mxu0 0
    %1100 = vmatpush2.bf16.msra.mxu0 %v1044
    %1101 = vmatprep.subr.bf16.mxu0 0
    %1102 = vmatpush2.bf16.msra.mxu0 %v1043
    %1103 = vmatprep.subr.bf16.mxu0 0
    %1104 = vmatpush2.bf16.msra.mxu0 %v1042
    %1105 = vmatprep.subr.bf16.mxu0 0
    %1106 = vmatpush2.bf16.msra.mxu0 %v1041
    %1107 = vmatprep.subr.bf16.mxu0 0
    %1108 = vmatpush2.bf16.msra.mxu0 %v1040
    %1109 = vmatprep.subr.bf16.mxu0 0
    %1110 = vmatpush2.bf16.msra.mxu0 %v1039
    %1111 = vmatprep.mubr.bf16.mxu0 %v878
    %1112 = vmatmul.mubr.bf16.gmra.mxu0 %v877
    %v1113 = vpop.f32.mrf.mxu0
    %v1114 = vadd.f32 %v933, %v1113
    %v1115 = vpop.f32.mrf.mxu0
    %v1116 = vpop.f32.mrf.mxu0
    %v1117 = vadd.f32 %v933, %v1116
    %v1118 = vpop.f32.mrf.mxu0
    %1119 = vdwg.mxu0
    %1120 = vmatprep.subr.bf16.mxu0 0
    %1121 = vmatpush1.bf16.msra.mxu0 %v1054
    %1122 = vmatprep.subr.bf16.mxu0 0
    %1123 = vmatpush1.bf16.msra.mxu0 %v1053
    %1124 = vmatprep.subr.bf16.mxu0 0
    %1125 = vmatpush1.bf16.msra.mxu0 %v1052
    %1126 = vmatprep.subr.bf16.mxu0 0
    %1127 = vmatpush1.bf16.msra.mxu0 %v1051
    %1128 = vmatprep.subr.bf16.mxu0 0
    %1129 = vmatpush1.bf16.msra.mxu0 %v1050
    %1130 = vmatprep.subr.bf16.mxu0 0
    %1131 = vmatpush1.bf16.msra.mxu0 %v1049
    %1132 = vmatprep.subr.bf16.mxu0 0
    %1133 = vmatpush1.bf16.msra.mxu0 %v1048
    %1134 = vmatprep.subr.bf16.mxu0 0
    %1135 = vmatpush1.bf16.msra.mxu0 %v1047
    %1136 = vmatprep.subr.bf16.mxu0 0
    %1137 = vmatpush2.bf16.msra.mxu0 0
    %1138 = vmatprep.subr.bf16.mxu0 0
    %1139 = vmatpush2.bf16.msra.mxu0 0
    %1140 = vmatprep.subr.bf16.mxu0 0
    %1141 = vmatpush2.bf16.msra.mxu0 0
    %1142 = vmatprep.subr.bf16.mxu0 0
    %1143 = vmatpush2.bf16.msra.mxu0 0
    %1144 = vmatprep.subr.bf16.mxu0 0
    %1145 = vmatpush2.bf16.msra.mxu0 0
    %1146 = vmatprep.subr.bf16.mxu0 0
    %1147 = vmatpush2.bf16.msra.mxu0 0
    %1148 = vmatprep.subr.bf16.mxu0 0
    %1149 = vmatpush2.bf16.msra.mxu0 0
    %1150 = vmatprep.subr.bf16.mxu0 0
    %1151 = vmatpush2.bf16.msra.mxu0 0
    %1152 = vmatprep.mubr.bf16.mxu0 0
    %1153 = vmatmul.mubr.bf16.gmra.mxu0 %v879
    %v1154 = vpop.f32.mrf.mxu0
    %v1155 = vadd.f32 %v1114, %v1154
    %v1156 = vpop.f32.mrf.mxu0
    %v1157 = vpop.f32.mrf.mxu0
    %v1158 = vadd.f32 %v1117, %v1157
    %v1159 = vpop.f32.mrf.mxu0
    %1160 = vdwg.mxu0
    %v1161 = vmax.f32 %v1155, 0.0
    %v1162 = vmax.f32 %v1158, 0.0
    %v1163 = vrot.slane %v1161, 7
    %v1164 = vrot.slane %v1162, 7
    %v1165 = vsel %vm865, %v1163, %v1164
    %v1166 = vsel %vm865, %v1164, %v1163
    %v1167 = vmul.f32 %v1166, %v855
    %v1168 = vmul.f32 %v1165, %v856
    %v1169 = vrot.slane %v1161, 1
    %v1170 = vrot.slane %v1162, 1
    %v1171 = vsel %vm872, %v1169, %v1170
    %v1172 = vsel %vm872, %v1170, %v1169
    %v1173 = vmul.f32 %v1171, %v861
    %v1174 = vmul.f32 %v1172, %v862
    %v1175 = vpack.c.bf16 %v1162, %v1161
    %v1176 = vpack.c.bf16 %v1168, %v1167
    %v1177 = vpack.c.bf16 %v1174, %v1173
    %s1178 = scalar_lea.vmem [#allocation4], 192
    %v1179 = vld [vmem:[%s1178] sm:$0xf]
    %v1180 = vld [vmem:[%s1178 + $0x4] sm:$0xf]
    %v1181 = vld [vmem:[%s1178 + $0x8] sm:$0xf]
    %v1182 = vld [vmem:[%s1178 + $0xc] sm:$0xf]
    %v1183 = vld [vmem:[%s1178 + $0x10] sm:$0xf]
    %v1184 = vld [vmem:[%s1178 + $0x14] sm:$0xf]
    %v1185 = vld [vmem:[%s1178 + $0x18] sm:$0xf]
    %v1186 = vld [vmem:[%s1178 + $0x1c] sm:$0xf]
    %v1187 = vld [vmem:[%s1178 + $0x20] sm:$0xf]
    %v1188 = vld [vmem:[%s1178 + $0x24] sm:$0xf]
    %v1189 = vld [vmem:[%s1178 + $0x28] sm:$0xf]
    %v1190 = vld [vmem:[%s1178 + $0x2c] sm:$0xf]
    %v1191 = vld [vmem:[%s1178 + $0x30] sm:$0xf]
    %v1192 = vld [vmem:[%s1178 + $0x34] sm:$0xf]
    %v1193 = vld [vmem:[%s1178 + $0x38] sm:$0xf]
    %v1194 = vld [vmem:[%s1178 + $0x3c] sm:$0xf]
    %v1195 = vld [vmem:[%s1178 + $0x40] sm:$0xf]
    %v1196 = vld [vmem:[%s1178 + $0x44] sm:$0xf]
    %v1197 = vld [vmem:[%s1178 + $0x48] sm:$0xf]
    %v1198 = vld [vmem:[%s1178 + $0x4c] sm:$0xf]
    %v1199 = vld [vmem:[%s1178 + $0x50] sm:$0xf]
    %v1200 = vld [vmem:[%s1178 + $0x54] sm:$0xf]
    %v1201 = vld [vmem:[%s1178 + $0x58] sm:$0xf]
    %v1202 = vld [vmem:[%s1178 + $0x5c] sm:$0xf]
    %v1203 = vld [vmem:[%s1178 + $0x60] sm:$0xf]
    %v1204 = vld [vmem:[%s1178 + $0x64] sm:$0xf]
    %v1205 = vld [vmem:[%s1178 + $0x68] sm:$0xf]
    %v1206 = vld [vmem:[%s1178 + $0x6c] sm:$0xf]
    %v1207 = vld [vmem:[%s1178 + $0x70] sm:$0xf]
    %v1208 = vld [vmem:[%s1178 + $0x74] sm:$0xf]
    %v1209 = vld [vmem:[%s1178 + $0x78] sm:$0xf]
    %v1210 = vld [vmem:[%s1178 + $0x7c] sm:$0xf]
    %v1211 = vld [vmem:[%s1178 + $0x80] sm:$0xf]
    %v1212 = vld [vmem:[%s1178 + $0x84] sm:$0xf]
    %v1213 = vld [vmem:[%s1178 + $0x88] sm:$0xf]
    %v1214 = vld [vmem:[%s1178 + $0x8c] sm:$0xf]
    %v1215 = vld [vmem:[%s1178 + $0x90] sm:$0xf]
    %v1216 = vld [vmem:[%s1178 + $0x94] sm:$0xf]
    %v1217 = vld [vmem:[%s1178 + $0x98] sm:$0xf]
    %v1218 = vld [vmem:[%s1178 + $0x9c] sm:$0xf]
    %v1219 = vld [vmem:[%s1178 + $0xa0] sm:$0xf]
    %v1220 = vld [vmem:[%s1178 + $0xa4] sm:$0xf]
    %v1221 = vld [vmem:[%s1178 + $0xa8] sm:$0xf]
    %v1222 = vld [vmem:[%s1178 + $0xac] sm:$0xf]
    %v1223 = vld [vmem:[%s1178 + $0xb0] sm:$0xf]
    %v1224 = vld [vmem:[%s1178 + $0xb4] sm:$0xf]
    %v1225 = vld [vmem:[%s1178 + $0xb8] sm:$0xf]
    %v1226 = vld [vmem:[%s1178 + $0xbc] sm:$0xf]
    %s1227 = scalar_lea.vmem %s6, 1
    %v1228 = vld [vmem:[%s1227] sm:$0x1]
    %v1230 = vlaneseq
    %v1231 = vshrl.u32 %v1230, 7
    %v1232 = vsub.s32 0, %v1231
    %v1233 = vrot.slane %v1228, %v1232
    %v1283 = vunpack.c.l.b16 %v1179
    %v1284 = vunpack.c.l.b16 %v1180
    %v1285 = vunpack.c.l.b16 %v1181
    %v1286 = vunpack.c.l.b16 %v1182
    %v1287 = vunpack.c.l.b16 %v1183
    %v1288 = vunpack.c.l.b16 %v1184
    %v1289 = vunpack.c.l.b16 %v1185
    %v1290 = vunpack.c.l.b16 %v1186
    %v1291 = vunpack.c.l.b16 %v1187
    %v1292 = vunpack.c.l.b16 %v1188
    %v1293 = vunpack.c.l.b16 %v1189
    %v1294 = vunpack.c.l.b16 %v1190
    %v1295 = vunpack.c.l.b16 %v1191
    %v1296 = vunpack.c.l.b16 %v1192
    %v1297 = vunpack.c.l.b16 %v1193
    %v1298 = vunpack.c.l.b16 %v1194
    %v1299 = vunpack.c.l.b16 %v1195
    %v1300 = vunpack.c.l.b16 %v1196
    %v1301 = vunpack.c.l.b16 %v1197
    %v1302 = vunpack.c.l.b16 %v1198
    %v1303 = vunpack.c.l.b16 %v1199
    %v1304 = vunpack.c.l.b16 %v1200
    %v1305 = vunpack.c.l.b16 %v1201
    %v1306 = vunpack.c.l.b16 %v1202
    %v1307 = vunpack.c.l.b16 %v1203
    %v1308 = vunpack.c.l.b16 %v1204
    %v1309 = vunpack.c.l.b16 %v1205
    %v1310 = vunpack.c.l.b16 %v1206
    %v1311 = vunpack.c.l.b16 %v1207
    %v1312 = vunpack.c.l.b16 %v1208
    %v1313 = vunpack.c.l.b16 %v1209
    %v1314 = vunpack.c.l.b16 %v1210
    %v1315 = vunpack.c.l.b16 %v1211
    %v1316 = vunpack.c.l.b16 %v1212
    %v1317 = vunpack.c.l.b16 %v1213
    %v1318 = vunpack.c.l.b16 %v1214
    %v1319 = vunpack.c.l.b16 %v1215
    %v1320 = vunpack.c.l.b16 %v1216
    %v1321 = vunpack.c.l.b16 %v1217
    %v1322 = vunpack.c.l.b16 %v1218
    %v1323 = vunpack.c.l.b16 %v1219
    %v1324 = vunpack.c.l.b16 %v1220
    %v1325 = vunpack.c.l.b16 %v1221
    %v1326 = vunpack.c.l.b16 %v1222
    %v1327 = vunpack.c.l.b16 %v1223
    %v1328 = vunpack.c.l.b16 %v1224
    %v1329 = vunpack.c.l.b16 %v1225
    %v1330 = vunpack.c.l.b16 %v1226
    %v1331 = vpack.c.b16 %v1284, %v1283
    %v1332 = vpack.c.b16 %v1286, %v1285
    %v1333 = vpack.c.b16 %v1288, %v1287
    %v1334 = vpack.c.b16 %v1290, %v1289
    %v1335 = vpack.c.b16 %v1292, %v1291
    %v1336 = vpack.c.b16 %v1294, %v1293
    %v1337 = vpack.c.b16 %v1296, %v1295
    %v1338 = vpack.c.b16 %v1298, %v1297
    %v1339 = vpack.c.b16 %v1300, %v1299
    %v1340 = vpack.c.b16 %v1302, %v1301
    %v1341 = vpack.c.b16 %v1304, %v1303
    %v1342 = vpack.c.b16 %v1306, %v1305
    %v1343 = vpack.c.b16 %v1308, %v1307
    %v1344 = vpack.c.b16 %v1310, %v1309
    %v1345 = vpack.c.b16 %v1312, %v1311
    %v1346 = vpack.c.b16 %v1314, %v1313
    %v1347 = vpack.c.b16 %v1316, %v1315
    %v1348 = vpack.c.b16 %v1318, %v1317
    %v1349 = vpack.c.b16 %v1320, %v1319
    %v1350 = vpack.c.b16 %v1322, %v1321
    %v1351 = vpack.c.b16 %v1324, %v1323
    %v1352 = vpack.c.b16 %v1326, %v1325
    %v1353 = vpack.c.b16 %v1328, %v1327
    %v1354 = vpack.c.b16 %v1330, %v1329
    %1379 = vmatprep.subr.bf16.mxu0 0
    %1380 = vmatpush1.bf16.msra.mxu0 %v1338
    %1381 = vmatprep.subr.bf16.mxu0 0
    %1382 = vmatpush1.bf16.msra.mxu0 %v1337
    %1383 = vmatprep.subr.bf16.mxu0 0
    %1384 = vmatpush1.bf16.msra.mxu0 %v1336
    %1385 = vmatprep.subr.bf16.mxu0 0
    %1386 = vmatpush1.bf16.msra.mxu0 %v1335
    %1387 = vmatprep.subr.bf16.mxu0 0
    %1388 = vmatpush1.bf16.msra.mxu0 %v1334
    %1389 = vmatprep.subr.bf16.mxu0 0
    %1390 = vmatpush1.bf16.msra.mxu0 %v1333
    %1391 = vmatprep.subr.bf16.mxu0 0
    %1392 = vmatpush1.bf16.msra.mxu0 %v1332
    %1393 = vmatprep.subr.bf16.mxu0 0
    %1394 = vmatpush1.bf16.msra.mxu0 %v1331
    %1395 = vmatprep.subr.bf16.mxu0 0
    %1396 = vmatpush2.bf16.msra.mxu0 %v1346
    %1397 = vmatprep.subr.bf16.mxu0 0
    %1398 = vmatpush2.bf16.msra.mxu0 %v1345
    %1399 = vmatprep.subr.bf16.mxu0 0
    %1400 = vmatpush2.bf16.msra.mxu0 %v1344
    %1401 = vmatprep.subr.bf16.mxu0 0
    %1402 = vmatpush2.bf16.msra.mxu0 %v1343
    %1403 = vmatprep.subr.bf16.mxu0 0
    %1404 = vmatpush2.bf16.msra.mxu0 %v1342
    %1405 = vmatprep.subr.bf16.mxu0 0
    %1406 = vmatpush2.bf16.msra.mxu0 %v1341
    %1407 = vmatprep.subr.bf16.mxu0 0
    %1408 = vmatpush2.bf16.msra.mxu0 %v1340
    %1409 = vmatprep.subr.bf16.mxu0 0
    %1410 = vmatpush2.bf16.msra.mxu0 %v1339
    %1411 = vmatprep.mubr.bf16.mxu0 %v1176
    %1412 = vmatmul.mubr.bf16.gmra.mxu0 %v1175
    %v1413 = vpop.f32.mrf.mxu0
    %v1414 = vadd.f32 %v1233, %v1413
    %v1415 = vpop.f32.mrf.mxu0
    %v1416 = vpop.f32.mrf.mxu0
    %v1417 = vadd.f32 %v1233, %v1416
    %v1418 = vpop.f32.mrf.mxu0
    %1419 = vdwg.mxu0
    %1420 = vmatprep.subr.bf16.mxu0 0
    %1421 = vmatpush1.bf16.msra.mxu0 %v1354
    %1422 = vmatprep.subr.bf16.mxu0 0
    %1423 = vmatpush1.bf16.msra.mxu0 %v1353
    %1424 = vmatprep.subr.bf16.mxu0 0
    %1425 = vmatpush1.bf16.msra.mxu0 %v1352
    %1426 = vmatprep.subr.bf16.mxu0 0
    %1427 = vmatpush1.bf16.msra.mxu0 %v1351
    %1428 = vmatprep.subr.bf16.mxu0 0
    %1429 = vmatpush1.bf16.msra.mxu0 %v1350
    %1430 = vmatprep.subr.bf16.mxu0 0
    %1431 = vmatpush1.bf16.msra.mxu0 %v1349
    %1432 = vmatprep.subr.bf16.mxu0 0
    %1433 = vmatpush1.bf16.msra.mxu0 %v1348
    %1434 = vmatprep.subr.bf16.mxu0 0
    %1435 = vmatpush1.bf16.msra.mxu0 %v1347
    %1436 = vmatprep.subr.bf16.mxu0 0
    %1437 = vmatpush2.bf16.msra.mxu0 0
    %1438 = vmatprep.subr.bf16.mxu0 0
    %1439 = vmatpush2.bf16.msra.mxu0 0
    %1440 = vmatprep.subr.bf16.mxu0 0
    %1441 = vmatpush2.bf16.msra.mxu0 0
    %1442 = vmatprep.subr.bf16.mxu0 0
    %1443 = vmatpush2.bf16.msra.mxu0 0
    %1444 = vmatprep.subr.bf16.mxu0 0
    %1445 = vmatpush2.bf16.msra.mxu0 0
    %1446 = vmatprep.subr.bf16.mxu0 0
    %1447 = vmatpush2.bf16.msra.mxu0 0
    %1448 = vmatprep.subr.bf16.mxu0 0
    %1449 = vmatpush2.bf16.msra.mxu0 0
    %1450 = vmatprep.subr.bf16.mxu0 0
    %1451 = vmatpush2.bf16.msra.mxu0 0
    %1452 = vmatprep.mubr.bf16.mxu0 0
    %1453 = vmatmul.mubr.bf16.gmra.mxu0 %v1177
    %v1454 = vpop.f32.mrf.mxu0
    %v1455 = vadd.f32 %v1414, %v1454
    %v1456 = vpop.f32.mrf.mxu0
    %v1457 = vpop.f32.mrf.mxu0
    %v1458 = vadd.f32 %v1417, %v1457
    %v1459 = vpop.f32.mrf.mxu0
    %1460 = vdwg.mxu0
    %v1461 = vmax.f32 %v1455, 0.0
    %v1462 = vmax.f32 %v1458, 0.0
    %v1463 = vpack.c.bf16 %v1462, %v1461
    %v1464 = vld [vmem:[%s7] sm:$0xf]
    %v1465 = vld [vmem:[%s7 + $0x4] sm:$0xf]
    %v1466 = vld [vmem:[%s7 + $0x8] sm:$0xf]
    %v1467 = vld [vmem:[%s7 + $0xc] sm:$0xf]
    %v1468 = vld [vmem:[%s7 + $0x10] sm:$0xf]
    %v1469 = vld [vmem:[%s7 + $0x14] sm:$0xf]
    %v1470 = vld [vmem:[%s7 + $0x18] sm:$0xf]
    %v1471 = vld [vmem:[%s7 + $0x1c] sm:$0xf]
    %v1472 = vld [vmem:[%s7 + $0x20] sm:$0xf]
    %v1473 = vld [vmem:[%s7 + $0x24] sm:$0xf]
    %v1474 = vld [vmem:[%s7 + $0x28] sm:$0xf]
    %v1475 = vld [vmem:[%s7 + $0x2c] sm:$0xf]
    %v1476 = vld [vmem:[%s7 + $0x30] sm:$0xf]
    %v1477 = vld [vmem:[%s7 + $0x34] sm:$0xf]
    %v1478 = vld [vmem:[%s7 + $0x38] sm:$0xf]
    %v1479 = vld [vmem:[%s7 + $0x3c] sm:$0xf]
    %v1480 = vld [vmem:[%s7 + $0x40] sm:$0xf]
    %v1481 = vld [vmem:[%s7 + $0x44] sm:$0xf]
    %v1482 = vld [vmem:[%s7 + $0x48] sm:$0xf]
    %v1483 = vld [vmem:[%s7 + $0x4c] sm:$0xf]
    %v1484 = vld [vmem:[%s7 + $0x50] sm:$0xf]
    %v1485 = vld [vmem:[%s7 + $0x54] sm:$0xf]
    %v1486 = vld [vmem:[%s7 + $0x58] sm:$0xf]
    %v1487 = vld [vmem:[%s7 + $0x5c] sm:$0xf]
    %v1488 = vld [vmem:[%s7 + $0x60] sm:$0xf]
    %v1489 = vld [vmem:[%s7 + $0x64] sm:$0xf]
    %v1490 = vld [vmem:[%s7 + $0x68] sm:$0xf]
    %v1491 = vld [vmem:[%s7 + $0x6c] sm:$0xf]
    %v1492 = vld [vmem:[%s7 + $0x70] sm:$0xf]
    %v1493 = vld [vmem:[%s7 + $0x74] sm:$0xf]
    %v1494 = vld [vmem:[%s7 + $0x78] sm:$0xf]
    %v1495 = vld [vmem:[%s7 + $0x7c] sm:$0xf]
    %v1496 = vld [vmem:[%s8] sm:$0x1]
    %v1498 = vlaneseq
    %v1499 = vshrl.u32 %v1498, 7
    %v1500 = vsub.s32 0, %v1499
    %v1501 = vrot.slane %v1496, %v1500
    %v1535 = vunpack.c.l.b16 %v1464
    %v1536 = vunpack.c.l.b16 %v1465
    %v1537 = vunpack.c.l.b16 %v1466
    %v1538 = vunpack.c.l.b16 %v1467
    %v1539 = vunpack.c.l.b16 %v1468
    %v1540 = vunpack.c.l.b16 %v1469
    %v1541 = vunpack.c.l.b16 %v1470
    %v1542 = vunpack.c.l.b16 %v1471
    %v1543 = vunpack.c.l.b16 %v1472
    %v1544 = vunpack.c.l.b16 %v1473
    %v1545 = vunpack.c.l.b16 %v1474
    %v1546 = vunpack.c.l.b16 %v1475
    %v1547 = vunpack.c.l.b16 %v1476
    %v1548 = vunpack.c.l.b16 %v1477
    %v1549 = vunpack.c.l.b16 %v1478
    %v1550 = vunpack.c.l.b16 %v1479
    %v1551 = vunpack.c.l.b16 %v1480
    %v1552 = vunpack.c.l.b16 %v1481
    %v1553 = vunpack.c.l.b16 %v1482
    %v1554 = vunpack.c.l.b16 %v1483
    %v1555 = vunpack.c.l.b16 %v1484
    %v1556 = vunpack.c.l.b16 %v1485
    %v1557 = vunpack.c.l.b16 %v1486
    %v1558 = vunpack.c.l.b16 %v1487
    %v1559 = vunpack.c.l.b16 %v1488
    %v1560 = vunpack.c.l.b16 %v1489
    %v1561 = vunpack.c.l.b16 %v1490
    %v1562 = vunpack.c.l.b16 %v1491
    %v1563 = vunpack.c.l.b16 %v1492
    %v1564 = vunpack.c.l.b16 %v1493
    %v1565 = vunpack.c.l.b16 %v1494
    %v1566 = vunpack.c.l.b16 %v1495
    %v1567 = vpack.c.b16 %v1536, %v1535
    %v1568 = vpack.c.b16 %v1538, %v1537
    %v1569 = vpack.c.b16 %v1540, %v1539
    %v1570 = vpack.c.b16 %v1542, %v1541
    %v1571 = vpack.c.b16 %v1544, %v1543
    %v1572 = vpack.c.b16 %v1546, %v1545
    %v1573 = vpack.c.b16 %v1548, %v1547
    %v1574 = vpack.c.b16 %v1550, %v1549
    %v1575 = vpack.c.b16 %v1552, %v1551
    %v1576 = vpack.c.b16 %v1554, %v1553
    %v1577 = vpack.c.b16 %v1556, %v1555
    %v1578 = vpack.c.b16 %v1558, %v1557
    %v1579 = vpack.c.b16 %v1560, %v1559
    %v1580 = vpack.c.b16 %v1562, %v1561
    %v1581 = vpack.c.b16 %v1564, %v1563
    %v1582 = vpack.c.b16 %v1566, %v1565
    %1599 = vmatprep.subr.bf16.mxu0 0
    %1600 = vmatpush1.bf16.msra.mxu0 %v1574
    %1601 = vmatprep.subr.bf16.mxu0 0
    %1602 = vmatpush1.bf16.msra.mxu0 %v1573
    %1603 = vmatprep.subr.bf16.mxu0 0
    %1604 = vmatpush1.bf16.msra.mxu0 %v1572
    %1605 = vmatprep.subr.bf16.mxu0 0
    %1606 = vmatpush1.bf16.msra.mxu0 %v1571
    %1607 = vmatprep.subr.bf16.mxu0 0
    %1608 = vmatpush1.bf16.msra.mxu0 %v1570
    %1609 = vmatprep.subr.bf16.mxu0 0
    %1610 = vmatpush1.bf16.msra.mxu0 %v1569
    %1611 = vmatprep.subr.bf16.mxu0 0
    %1612 = vmatpush1.bf16.msra.mxu0 %v1568
    %1613 = vmatprep.subr.bf16.mxu0 0
    %1614 = vmatpush1.bf16.msra.mxu0 %v1567
    %1615 = vmatprep.subr.bf16.mxu0 0
    %1616 = vmatpush2.bf16.msra.mxu0 %v1582
    %1617 = vmatprep.subr.bf16.mxu0 0
    %1618 = vmatpush2.bf16.msra.mxu0 %v1581
    %1619 = vmatprep.subr.bf16.mxu0 0
    %1620 = vmatpush2.bf16.msra.mxu0 %v1580
    %1621 = vmatprep.subr.bf16.mxu0 0
    %1622 = vmatpush2.bf16.msra.mxu0 %v1579
    %1623 = vmatprep.subr.bf16.mxu0 0
    %1624 = vmatpush2.bf16.msra.mxu0 %v1578
    %1625 = vmatprep.subr.bf16.mxu0 0
    %1626 = vmatpush2.bf16.msra.mxu0 %v1577
    %1627 = vmatprep.subr.bf16.mxu0 0
    %1628 = vmatpush2.bf16.msra.mxu0 %v1576
    %1629 = vmatprep.subr.bf16.mxu0 0
    %1630 = vmatpush2.bf16.msra.mxu0 %v1575
    %1631 = vmatprep.mubr.bf16.mxu0 %v1463
    %1632 = vmatmul.mubr.bf16.gmra.mxu0 %v877
    %v1633 = vpop.f32.mrf.mxu0
    %v1634 = vadd.f32 %v1501, %v1633
    %v1635 = vpop.f32.mrf.mxu0
    %v1636 = vpop.f32.mrf.mxu0
    %v1637 = vadd.f32 %v1501, %v1636
    %v1638 = vpop.f32.mrf.mxu0
    %1639 = vdwg.mxu0
    %1640 = vst [vmem:[%s11] sm:$0xff] %v1634
    %1641 = vst [vmem:[%s11 + $0x8] sm:$0xff] %v1637
    %v1642 = vld [vmem:[%s9] sm:$0xff]
    %v1643 = vld [vmem:[%s9 + $0x8] sm:$0xff]
    %v1644 = vld [vmem:[%s10] sm:$0xff]
    %v1645 = vld [vmem:[%s10 + $0x8] sm:$0xff]
    %vm1646 = vcmp.eq.s32.totalorder %v1644, 1
    %vm1647 = vcmp.eq.s32.totalorder %v1645, 1
    %v1648 = vsel %vm1646, 1, 0
    %v1649 = vsel %vm1647, 1, 0
    %v1650 = vcvt.s32.f32 %v1648
    %v1651 = vcvt.s32.f32 %v1649
    %v1652 = vlaneseq
    %v1653 = vand.u32 %v1652, 127
    %1654 = vset.pattern.permute.xlu0 0
    %1655 = vperm.xlu0 %1654, %v1642
    %v1656 = vpop.permute.xlu0 %1655
    %1657 = vset.pattern.permute.xlu0 0
    %1658 = vperm.xlu0 %1657, %v1643
    %v1659 = vpop.permute.xlu0 %1658
    %vm1660 = vcmp.eq.s32.totalorder %v1653, %v1656
    %vm1661 = vcmp.eq.s32.totalorder %v1653, %v1659
    %v1662 = vsel %vm1660, 1, 0
    %v1663 = vsel %vm1661, 1, 0
    %v1664 = vcvt.s32.f32 %v1662
    %v1665 = vcvt.s32.f32 %v1663
    %1666 = vmax.xlane.f32.xlu0 %v1634
    %v1667 = vpop.xlane.xlu0 %1666
    %1668 = vmax.xlane.f32.xlu0 %v1637
    %v1669 = vpop.xlane.xlu0 %1668
    %v1670 = vsub.f32 %v1634, %v1667
    %v1671 = vsub.f32 %v1637, %v1669
    %v1672 = vmul.f32 %v1670, 1.442695
    %v1673 = vpow.pop %v1672
    %v1674 = vmul.f32 %v1671, 1.442695
    %v1675 = vpow.pop %v1674
    %1676 = vadd.xlane.f32.xlu0 %v1673
    %v1677 = vpop.xlane.xlu0 %1676
    %1678 = vadd.xlane.f32.xlu0 %v1675
    %v1679 = vpop.xlane.xlu0 %1678
    %v1680 = vlog2.pop %v1677
    %v1681 = vmul.f32 %v1680, 0.6931472
    %v1682 = vlog2.pop %v1679
    %v1683 = vmul.f32 %v1682, 0.6931472
    %v1684 = vsub.f32 %v1670, %v1681
    %v1685 = vsub.f32 %v1671, %v1683
    %v1686 = vmul.f32 %v1664, %v1684
    %v1687 = vmul.f32 %v1665, %v1685
    %1688 = vadd.xlane.f32.xlu0 %v1686
    %v1689 = vpop.xlane.xlu0 %1688
    %1690 = vadd.xlane.f32.xlu0 %v1687
    %v1691 = vpop.xlane.xlu0 %1690
    %v1692 = vsub.f32 0.0, %v1689
    %v1693 = vsub.f32 0.0, %v1691
    %v1694 = vmul.f32 %v1692, %v1650
    %v1695 = vmul.f32 %v1693, %v1651
    %vm1696 = vcmask 7168
    %v1697 = vsel %vm1696, %v1694, 0.0
    %v1698 = vsel %vm1696, %v1695, 0.0
    %v1699 = vadd.f32 %v1697, %v1698
    %1700 = vadd.xlane.f32.xlu0 %v1699
    %v1701 = vpop.xlane.xlu0 %1700
    %v1702 = vrot.slane %v1701, 4
    %v1703 = vadd.f32 %v1701, %v1702
    %v1704 = vrot.slane %v1703, 2
    %v1705 = vadd.f32 %v1703, %v1704
    %v1706 = vrot.slane %v1705, 1
    %v1707 = vadd.f32 %v1705, %v1706
    %s1708 = vtos %v1707
    %v1709 = vsel %vm1696, %v1650, 0.0
    %v1710 = vsel %vm1696, %v1651, 0.0
    %v1711 = vadd.f32 %v1709, %v1710
    %1712 = vadd.xlane.f32.xlu0 %v1711
    %v1713 = vpop.xlane.xlu0 %1712
    %v1714 = vrot.slane %v1713, 4
    %v1715 = vadd.f32 %v1713, %v1714
    %v1716 = vrot.slane %v1715, 2
    %v1717 = vadd.f32 %v1715, %v1716
    %v1718 = vrot.slane %v1717, 1
    %v1719 = vadd.f32 %v1717, %v1718
    %s1720 = vtos %v1719
    %vm1721 = vcmp.eq.s32.totalorder %v1653, 0
    %v1722 = vstv %s1708
    %v1723 = vsel %vm1721, %v1722, 0.0
    %vm1724 = vcmp.eq.s32.totalorder %v1653, 1
    %v1725 = vstv %s1720
    %v1726 = vsel %vm1724, %v1725, 0.0
    %v1727 = vadd.f32 %v1723, %v1726
    %1728 = vst [vmem:[%s12] sm:$0x1] %v1727
    // Predicated region
    $region54: #{rgcn_concat_forward.1} parent=1 // pred_check
      _
    $region55: #{rgcn_concat_forward.1} parent=1 // pred_check_branch
      %1730 = sbr.rel (0) target = $region57
    $region56: #{rgcn_concat_forward.1} parent=1 // pred_region
      _
    $region57: #{rgcn_concat_forward.1} parent=1 // pred_fallthru
      _
    // Predicated region
    $region58: #{rgcn_concat_forward.1} parent=1 // pred_check
      _
    $region59: #{rgcn_concat_forward.1} parent=1 // pred_check_branch
      %1732 = sbr.rel (0) target = $region61
    $region60: #{rgcn_concat_forward.1} parent=1 // pred_region
      _
    $region61: #{rgcn_concat_forward.1} parent=1 // pred_fallthru
      _
    // Predicated region
    $region62: #{rgcn_concat_forward.1} parent=1 // pred_check
      _
    $region63: #{rgcn_concat_forward.1} parent=1 // pred_check_branch
      %1734 = sbr.rel (0) target = $region65
    $region64: #{rgcn_concat_forward.1} parent=1 // pred_region
      _
    $region65: #{rgcn_concat_forward.1} parent=1 // pred_fallthru
      _
    // Predicated region
    $region66: #{rgcn_concat_forward.1} parent=1 // pred_check
      _
    $region67: #{rgcn_concat_forward.1} parent=1 // pred_check_branch
      %1736 = sbr.rel (0) target = $region69
    $region68: #{rgcn_concat_forward.1} parent=1 // pred_region
      _
    $region69: #{rgcn_concat_forward.1} parent=1 // pred_fallthru
      _
    %1737 = vsyncpa [#allocation3], 1
    %1738 = vsyncpa [#allocation5], 1

</llo_original>
